<compile_context>
chip_gen: v6e
topology: v6e:2x2x1
jax: 0.10.0
libtpu: 0.0.40
codegen_flags: <defaults>
</compile_context>

<pallas_src>
import math
import jax
import jax.numpy as jnp
from jax.experimental import pallas as pl
from jax.experimental.pallas import tpu as pltpu  # noqa: F401  (kept for TPU-specific extensions)

# ---------------- problem sizes (small, consistent with the module) ----------------
B = 2            # batch (mb_size)
L = 8            # sequence length (len_q == len_k == len_v)
D = 32           # input_size == d_model  (use_proj=False => n_head*d_v == input_size)
N_HEAD = 4
D_K = 8
D_V = 8
LN_EPS = 1e-3


# ---------------- fused multi-head attention kernel ----------------
def mha_fused_kernel(qkv_ref, w_ref, ln_ref, out_ref, attn_ref):
    # qkv_ref : (B*L, 3*D)        rows = flattened (b, l); lanes = [q | k | v]
    # w_ref   : (3*D, 3*D)        block-diagonal [Wq/temper | Wk | Wv], heads stacked on lanes
    # ln_ref  : (2, D)            row 0 = a_2, row 1 = b_2
    # out_ref : (B, L, D)         layer_norm(concat_heads + residual_q)
    # attn_ref: (N_HEAD, B, L, L) attention maps (wrapper reshapes to (N_HEAD*B, L, L))
    x = qkv_ref[...].astype(jnp.float32)                                  # (16, 96)

    # All Q/K/V head projections in a single MXU matmul (temper folded into the Q block).
    p = jnp.dot(x, w_ref[...], preferred_element_type=jnp.float32)       # (16, 96)
    p3 = p.reshape(B, L, 3 * D)                                          # free leading-dim split
    q3 = p3[:, :, 0:D]                                                   # (B, L, H*D_K)
    k3 = p3[:, :, D:2 * D]
    v3 = p3[:, :, 2 * D:3 * D]
    residual = x[:, 0:D].reshape(B, L, D)                                # original q

    attn_heads = []
    out_heads = []
    for h in range(N_HEAD):                    # static unroll; all slices are static lane slices
        qh = q3[:, :, h * D_K:(h + 1) * D_K]
        kh = k3[:, :, h * D_K:(h + 1) * D_K]
        vh = v3[:, :, h * D_V:(h + 1) * D_V]

        s = jnp.einsum('blk,bmk->blm', qh, kh, preferred_element_type=jnp.float32)
        m = jnp.max(s, axis=-1, keepdims=True)
        e = jnp.exp(s - m)
        # exact reciprocal: approx=True would violate the 1e-5 attn tolerance
        r = pl.reciprocal(jnp.sum(e, axis=-1, keepdims=True), approx=False)
        a = e * r

        attn_heads.append(a)
        out_heads.append(jnp.einsum('blm,bmv->blv', a, vh,
                                    preferred_element_type=jnp.float32))

    # One coalesced store of all attention maps (head-major, matches the torch view).
    attn_ref[...] = jnp.stack(attn_heads, axis=0).astype(attn_ref.dtype)

    # Head concat in registers (feature = h*d_v + v), residual add, LayerNorm, single store.
    z = jnp.concatenate(out_heads, axis=-1) + residual                   # (B, L, D)
    mu = jnp.mean(z, axis=-1, keepdims=True)
    var = jnp.sum((z - mu) ** 2, axis=-1, keepdims=True) / (D - 1)       # unbiased (torch.std)
    sigma = jnp.sqrt(var)
    a_2 = ln_ref[0:1, :].reshape(1, 1, D)
    b_2 = ln_ref[1:2, :].reshape(1, 1, D)
    out_ref[...] = ((z - mu) / (sigma + LN_EPS) * a_2 + b_2).astype(out_ref.dtype)


@jax.jit
def multi_head_attention(q, k, v, params):
    """Fused forward: returns (layer_norm(heads + q), attns) like the PyTorch module."""
    # Lane-concat q|k|v and flatten batch so the kernel gets ONE activation operand and the
    # projection is a single 2-D matmul (row-major reshape is free; concat fuses under jit).
    qkv = jnp.concatenate([q, k, v], axis=-1).reshape(B * L, 3 * D)
    out, attns = pl.pallas_call(
        mha_fused_kernel,
        out_shape=[
            jax.ShapeDtypeStruct((B, L, D), jnp.float32),
            jax.ShapeDtypeStruct((N_HEAD, B, L, L), jnp.float32),
        ],
    )(qkv, params['w_fused'], params['ln_ab'])
    # (H, B, L, L) -> (H*B, L, L): leading-dim merge, free, matches torch's view().
    return out, attns.reshape(N_HEAD * B, L, L)


# ---------------- pure-JAX reference (mirrors torch math on the raw head weights) ----------------
def multi_head_attention_ref(q, k, v, p):
    temper = math.sqrt(float(D))
    qs = jnp.einsum('bld,hdk->hblk', q, p['w_qs'])
    ks = jnp.einsum('bld,hdk->hblk', k, p['w_ks'])
    vs = jnp.einsum('bld,hdv->hblv', v, p['w_vs'])
    scores = jnp.einsum('hblk,hbmk->hblm', qs, ks) / temper
    attn = jax.nn.softmax(scores, axis=-1)
    oh = jnp.einsum('hblm,hbmv->hblv', attn, vs)                       # (H, B, L, d_v)
    concat = jnp.transpose(oh, (1, 2, 0, 3)).reshape(B, L, N_HEAD * D_V)
    z = concat + q
    mu = jnp.mean(z, axis=-1, keepdims=True)
    var = jnp.sum((z - mu) ** 2, axis=-1, keepdims=True) / (D - 1)
    out = (z - mu) / (jnp.sqrt(var) + LN_EPS) * p['ln_a'] + p['ln_b']
    return out, attn.reshape(N_HEAD * B, L, L)


# ---------------- deterministic parameter init (offline weight transforms done here) ----------------
def init_params(key):
    ks = jax.random.split(key, 3)

    def xavier(k, shape, fan_in, fan_out):
        std = math.sqrt(2.0 / (fan_in + fan_out))
        return (std * jax.random.normal(k, shape)).astype(jnp.float32)

    w_qs = xavier(ks[0], (N_HEAD, D, D_K), D, D_K)
    w_ks = xavier(ks[1], (N_HEAD, D, D_K), D, D_K)
    w_vs = xavier(ks[2], (N_HEAD, D, D_V), D, D_V)

    temper = math.sqrt(float(D))  # sqrt(d_model), as in ScaledDotProductAttention(input_size)

    # Heads stacked along lanes: wq_stacked[d, h*d_k + k] = w_qs[h, d, k]; temper folded into Wq.
    wq_stacked = (jnp.transpose(w_qs, (1, 0, 2)) / temper).reshape(D, N_HEAD * D_K)
    wk_stacked = jnp.transpose(w_ks, (1, 0, 2)).reshape(D, N_HEAD * D_K)
    wv_stacked = jnp.transpose(w_vs, (1, 0, 2)).reshape(D, N_HEAD * D_V)

    # Block-diagonal fused weight: one (16,96)@(96,96) matmul yields [Q|K|V] for all heads.
    w_fused = jnp.zeros((3 * D, 3 * D), jnp.float32)
    w_fused = w_fused.at[0:D, 0:D].set(wq_stacked)
    w_fused = w_fused.at[D:2 * D, D:2 * D].set(wk_stacked)
    w_fused = w_fused.at[2 * D:3 * D, 2 * D:3 * D].set(wv_stacked)

    ln_a = jnp.ones((1, D), jnp.float32)
    ln_b = jnp.zeros((1, D), jnp.float32)

    return {
        # raw head-layout weights (what the torch module holds) -- used by the reference
        'w_qs': w_qs, 'w_ks': w_ks, 'w_vs': w_vs,
        'ln_a': ln_a, 'ln_b': ln_b,
        # offline transforms used by the kernel
        'w_fused': w_fused,
        'ln_ab': jnp.concatenate([ln_a, ln_b], axis=0),   # (2, D)
    }


if __name__ == "__main__":
    key = jax.random.PRNGKey(0)
    k_q, k_k, k_v, k_p = jax.random.split(key, 4)
    q = jax.random.normal(k_q, (B, L, D), dtype=jnp.float32)
    k = jax.random.normal(k_k, (B, L, D), dtype=jnp.float32)
    v = jax.random.normal(k_v, (B, L, D), dtype=jnp.float32)
    params = init_params(k_p)

    out, attns = multi_head_attention(q, k, v, params)
    out = jax.block_until_ready(out)
    attns = jax.block_until_ready(attns)

    ref_out, ref_attns = multi_head_attention_ref(q, k, v, params)
    assert out.shape == (B, L, D) and attns.shape == (N_HEAD * B, L, L)
    assert jnp.allclose(out, ref_out, atol=1e-4, rtol=1e-4)
    assert jnp.allclose(attns, ref_attns, atol=1e-5, rtol=1e-5)

    print("KERNEL_OK")
</pallas_src>

<mosaic_0001>
module attributes {stable_mosaic.version = 11 : i64} {
  func.func @mha_fused_kernel(%arg0: memref<16x96xf32, #tpu.memory_space<vmem>>, %arg1: memref<96x96xf32, #tpu.memory_space<vmem>>, %arg2: memref<2x32xf32, #tpu.memory_space<vmem>>, %arg3: memref<2x8x32xf32, #tpu.memory_space<vmem>>, %arg4: memref<4x2x8x8xf32, #tpu.memory_space<vmem>>) attributes {dimension_semantics = [], scalar_prefetch = 0 : i64, scratch_operands = 0 : i64, tpu.core_type = #tpu.core_type<tc>} {
    %c0 = arith.constant 0 : index
    %c0_0 = arith.constant 0 : index
    %0 = vector.load %arg0[%c0, %c0_0] : memref<16x96xf32, #tpu.memory_space<vmem>>, vector<16x96xf32>
    %c0_1 = arith.constant 0 : index
    %c0_2 = arith.constant 0 : index
    %1 = vector.load %arg1[%c0_1, %c0_2] : memref<96x96xf32, #tpu.memory_space<vmem>>, vector<96x96xf32>
    %cst = arith.constant dense<0.000000e+00> : vector<16x96xf32>
    %2 = tpu.matmul %0, %1, %cst {dimension_numbers = #tpu.dot_dimension_numbers<[1], [0], [0], [1], [0, 0, 1, 1], [], []>} : vector<16x96xf32>, vector<96x96xf32>, vector<16x96xf32> -> vector<16x96xf32>
    %3 = vector.shape_cast %2 : vector<16x96xf32> to vector<2x8x96xf32>
    %4 = vector.extract_strided_slice %3 {offsets = [0, 0, 0], sizes = [2, 8, 32], strides = [1, 1, 1]} : vector<2x8x96xf32> to vector<2x8x32xf32>
    %5 = vector.extract_strided_slice %3 {offsets = [0, 0, 32], sizes = [2, 8, 32], strides = [1, 1, 1]} : vector<2x8x96xf32> to vector<2x8x32xf32>
    %6 = vector.extract_strided_slice %3 {offsets = [0, 0, 64], sizes = [2, 8, 32], strides = [1, 1, 1]} : vector<2x8x96xf32> to vector<2x8x32xf32>
    %7 = vector.extract_strided_slice %0 {offsets = [0, 0], sizes = [16, 32], strides = [1, 1]} : vector<16x96xf32> to vector<16x32xf32>
    %8 = vector.shape_cast %7 : vector<16x32xf32> to vector<2x8x32xf32>
    %9 = vector.extract_strided_slice %4 {offsets = [0, 0, 0], sizes = [2, 8, 8], strides = [1, 1, 1]} : vector<2x8x32xf32> to vector<2x8x8xf32>
    %10 = vector.extract_strided_slice %5 {offsets = [0, 0, 0], sizes = [2, 8, 8], strides = [1, 1, 1]} : vector<2x8x32xf32> to vector<2x8x8xf32>
    %11 = vector.extract_strided_slice %6 {offsets = [0, 0, 0], sizes = [2, 8, 8], strides = [1, 1, 1]} : vector<2x8x32xf32> to vector<2x8x8xf32>
    "tpu.trace_start"() <{level = 10 : i32, message = "blk,bmk->blm"}> : () -> ()
    %cst_3 = arith.constant dense<0.000000e+00> : vector<2x8x8xf32>
    %12 = tpu.matmul %9, %10, %cst_3 {dimension_numbers = #tpu.dot_dimension_numbers<[2], [2], [1], [1], [0, 0, 0, 1, 1, 1], [0], [0]>} : vector<2x8x8xf32>, vector<2x8x8xf32>, vector<2x8x8xf32> -> vector<2x8x8xf32>
    "tpu.trace_stop"() : () -> ()
    %cst_4 = arith.constant dense<0xFF800000> : vector<2x8xf32>
    %13 = vector.multi_reduction <maximumf>, %12, %cst_4 [2] : vector<2x8x8xf32> to vector<2x8xf32>
    %14 = vector.shape_cast %13 : vector<2x8xf32> to vector<2x8x1xf32>
    %15 = vector.broadcast %14 : vector<2x8x1xf32> to vector<2x8x8xf32>
    %16 = arith.subf %12, %15 : vector<2x8x8xf32>
    %17 = math.exp %16 : vector<2x8x8xf32>
    %cst_5 = arith.constant dense<0.000000e+00> : vector<2x8xf32>
    %18 = vector.multi_reduction <add>, %17, %cst_5 [2] : vector<2x8x8xf32> to vector<2x8xf32>
    %19 = vector.shape_cast %18 : vector<2x8xf32> to vector<2x8x1xf32>
    %20 = tpu.reciprocal %19 : vector<2x8x1xf32> -> vector<2x8x1xf32>
    %21 = vector.broadcast %20 : vector<2x8x1xf32> to vector<2x8x8xf32>
    %22 = arith.mulf %17, %21 : vector<2x8x8xf32>
    "tpu.trace_start"() <{level = 10 : i32, message = "blm,bmv->blv"}> : () -> ()
    %cst_6 = arith.constant dense<0.000000e+00> : vector<2x8x8xf32>
    %23 = tpu.matmul %22, %11, %cst_6 {dimension_numbers = #tpu.dot_dimension_numbers<[2], [1], [1], [2], [0, 0, 0, 1, 1, 2], [0], [0]>} : vector<2x8x8xf32>, vector<2x8x8xf32>, vector<2x8x8xf32> -> vector<2x8x8xf32>
    "tpu.trace_stop"() : () -> ()
    %24 = vector.extract_strided_slice %4 {offsets = [0, 0, 8], sizes = [2, 8, 8], strides = [1, 1, 1]} : vector<2x8x32xf32> to vector<2x8x8xf32>
    %25 = vector.extract_strided_slice %5 {offsets = [0, 0, 8], sizes = [2, 8, 8], strides = [1, 1, 1]} : vector<2x8x32xf32> to vector<2x8x8xf32>
    %26 = vector.extract_strided_slice %6 {offsets = [0, 0, 8], sizes = [2, 8, 8], strides = [1, 1, 1]} : vector<2x8x32xf32> to vector<2x8x8xf32>
    "tpu.trace_start"() <{level = 10 : i32, message = "blk,bmk->blm"}> : () -> ()
    %cst_7 = arith.constant dense<0.000000e+00> : vector<2x8x8xf32>
    %27 = tpu.matmul %24, %25, %cst_7 {dimension_numbers = #tpu.dot_dimension_numbers<[2], [2], [1], [1], [0, 0, 0, 1, 1, 1], [0], [0]>} : vector<2x8x8xf32>, vector<2x8x8xf32>, vector<2x8x8xf32> -> vector<2x8x8xf32>
    "tpu.trace_stop"() : () -> ()
    %cst_8 = arith.constant dense<0xFF800000> : vector<2x8xf32>
    %28 = vector.multi_reduction <maximumf>, %27, %cst_8 [2] : vector<2x8x8xf32> to vector<2x8xf32>
    %29 = vector.shape_cast %28 : vector<2x8xf32> to vector<2x8x1xf32>
    %30 = vector.broadcast %29 : vector<2x8x1xf32> to vector<2x8x8xf32>
    %31 = arith.subf %27, %30 : vector<2x8x8xf32>
    %32 = math.exp %31 : vector<2x8x8xf32>
    %cst_9 = arith.constant dense<0.000000e+00> : vector<2x8xf32>
    %33 = vector.multi_reduction <add>, %32, %cst_9 [2] : vector<2x8x8xf32> to vector<2x8xf32>
    %34 = vector.shape_cast %33 : vector<2x8xf32> to vector<2x8x1xf32>
    %35 = tpu.reciprocal %34 : vector<2x8x1xf32> -> vector<2x8x1xf32>
    %36 = vector.broadcast %35 : vector<2x8x1xf32> to vector<2x8x8xf32>
    %37 = arith.mulf %32, %36 : vector<2x8x8xf32>
    "tpu.trace_start"() <{level = 10 : i32, message = "blm,bmv->blv"}> : () -> ()
    %cst_10 = arith.constant dense<0.000000e+00> : vector<2x8x8xf32>
    %38 = tpu.matmul %37, %26, %cst_10 {dimension_numbers = #tpu.dot_dimension_numbers<[2], [1], [1], [2], [0, 0, 0, 1, 1, 2], [0], [0]>} : vector<2x8x8xf32>, vector<2x8x8xf32>, vector<2x8x8xf32> -> vector<2x8x8xf32>
    "tpu.trace_stop"() : () -> ()
    %39 = vector.extract_strided_slice %4 {offsets = [0, 0, 16], sizes = [2, 8, 8], strides = [1, 1, 1]} : vector<2x8x32xf32> to vector<2x8x8xf32>
    %40 = vector.extract_strided_slice %5 {offsets = [0, 0, 16], sizes = [2, 8, 8], strides = [1, 1, 1]} : vector<2x8x32xf32> to vector<2x8x8xf32>
    %41 = vector.extract_strided_slice %6 {offsets = [0, 0, 16], sizes = [2, 8, 8], strides = [1, 1, 1]} : vector<2x8x32xf32> to vector<2x8x8xf32>
    "tpu.trace_start"() <{level = 10 : i32, message = "blk,bmk->blm"}> : () -> ()
    %cst_11 = arith.constant dense<0.000000e+00> : vector<2x8x8xf32>
    %42 = tpu.matmul %39, %40, %cst_11 {dimension_numbers = #tpu.dot_dimension_numbers<[2], [2], [1], [1], [0, 0, 0, 1, 1, 1], [0], [0]>} : vector<2x8x8xf32>, vector<2x8x8xf32>, vector<2x8x8xf32> -> vector<2x8x8xf32>
    "tpu.trace_stop"() : () -> ()
    %cst_12 = arith.constant dense<0xFF800000> : vector<2x8xf32>
    %43 = vector.multi_reduction <maximumf>, %42, %cst_12 [2] : vector<2x8x8xf32> to vector<2x8xf32>
    %44 = vector.shape_cast %43 : vector<2x8xf32> to vector<2x8x1xf32>
    %45 = vector.broadcast %44 : vector<2x8x1xf32> to vector<2x8x8xf32>
    %46 = arith.subf %42, %45 : vector<2x8x8xf32>
    %47 = math.exp %46 : vector<2x8x8xf32>
    %cst_13 = arith.constant dense<0.000000e+00> : vector<2x8xf32>
    %48 = vector.multi_reduction <add>, %47, %cst_13 [2] : vector<2x8x8xf32> to vector<2x8xf32>
    %49 = vector.shape_cast %48 : vector<2x8xf32> to vector<2x8x1xf32>
    %50 = tpu.reciprocal %49 : vector<2x8x1xf32> -> vector<2x8x1xf32>
    %51 = vector.broadcast %50 : vector<2x8x1xf32> to vector<2x8x8xf32>
    %52 = arith.mulf %47, %51 : vector<2x8x8xf32>
    "tpu.trace_start"() <{level = 10 : i32, message = "blm,bmv->blv"}> : () -> ()
    %cst_14 = arith.constant dense<0.000000e+00> : vector<2x8x8xf32>
    %53 = tpu.matmul %52, %41, %cst_14 {dimension_numbers = #tpu.dot_dimension_numbers<[2], [1], [1], [2], [0, 0, 0, 1, 1, 2], [0], [0]>} : vector<2x8x8xf32>, vector<2x8x8xf32>, vector<2x8x8xf32> -> vector<2x8x8xf32>
    "tpu.trace_stop"() : () -> ()
    %54 = vector.extract_strided_slice %4 {offsets = [0, 0, 24], sizes = [2, 8, 8], strides = [1, 1, 1]} : vector<2x8x32xf32> to vector<2x8x8xf32>
    %55 = vector.extract_strided_slice %5 {offsets = [0, 0, 24], sizes = [2, 8, 8], strides = [1, 1, 1]} : vector<2x8x32xf32> to vector<2x8x8xf32>
    %56 = vector.extract_strided_slice %6 {offsets = [0, 0, 24], sizes = [2, 8, 8], strides = [1, 1, 1]} : vector<2x8x32xf32> to vector<2x8x8xf32>
    "tpu.trace_start"() <{level = 10 : i32, message = "blk,bmk->blm"}> : () -> ()
    %cst_15 = arith.constant dense<0.000000e+00> : vector<2x8x8xf32>
    %57 = tpu.matmul %54, %55, %cst_15 {dimension_numbers = #tpu.dot_dimension_numbers<[2], [2], [1], [1], [0, 0, 0, 1, 1, 1], [0], [0]>} : vector<2x8x8xf32>, vector<2x8x8xf32>, vector<2x8x8xf32> -> vector<2x8x8xf32>
    "tpu.trace_stop"() : () -> ()
    %cst_16 = arith.constant dense<0xFF800000> : vector<2x8xf32>
    %58 = vector.multi_reduction <maximumf>, %57, %cst_16 [2] : vector<2x8x8xf32> to vector<2x8xf32>
    %59 = vector.shape_cast %58 : vector<2x8xf32> to vector<2x8x1xf32>
    %60 = vector.broadcast %59 : vector<2x8x1xf32> to vector<2x8x8xf32>
    %61 = arith.subf %57, %60 : vector<2x8x8xf32>
    %62 = math.exp %61 : vector<2x8x8xf32>
    %cst_17 = arith.constant dense<0.000000e+00> : vector<2x8xf32>
    %63 = vector.multi_reduction <add>, %62, %cst_17 [2] : vector<2x8x8xf32> to vector<2x8xf32>
    %64 = vector.shape_cast %63 : vector<2x8xf32> to vector<2x8x1xf32>
    %65 = tpu.reciprocal %64 : vector<2x8x1xf32> -> vector<2x8x1xf32>
    %66 = vector.broadcast %65 : vector<2x8x1xf32> to vector<2x8x8xf32>
    %67 = arith.mulf %62, %66 : vector<2x8x8xf32>
    "tpu.trace_start"() <{level = 10 : i32, message = "blm,bmv->blv"}> : () -> ()
    %cst_18 = arith.constant dense<0.000000e+00> : vector<2x8x8xf32>
    %68 = tpu.matmul %67, %56, %cst_18 {dimension_numbers = #tpu.dot_dimension_numbers<[2], [1], [1], [2], [0, 0, 0, 1, 1, 2], [0], [0]>} : vector<2x8x8xf32>, vector<2x8x8xf32>, vector<2x8x8xf32> -> vector<2x8x8xf32>
    "tpu.trace_stop"() : () -> ()
    %69 = vector.shape_cast %22 : vector<2x8x8xf32> to vector<1x2x8x8xf32>
    %70 = vector.shape_cast %37 : vector<2x8x8xf32> to vector<1x2x8x8xf32>
    %71 = vector.shape_cast %52 : vector<2x8x8xf32> to vector<1x2x8x8xf32>
    %72 = vector.shape_cast %67 : vector<2x8x8xf32> to vector<1x2x8x8xf32>
    %73 = tpu.concatenate %69, %70, %71, %72 in 0 : vector<1x2x8x8xf32>, vector<1x2x8x8xf32>, vector<1x2x8x8xf32>, vector<1x2x8x8xf32> -> vector<4x2x8x8xf32>
    %c0_19 = arith.constant 0 : index
    %c0_20 = arith.constant 0 : index
    %c0_21 = arith.constant 0 : index
    %c0_22 = arith.constant 0 : index
    %74 = vector.load %arg4[%c0_19, %c0_20, %c0_21, %c0_22] : memref<4x2x8x8xf32, #tpu.memory_space<vmem>>, vector<4x2x8x8xf32>
    tpu.vector_store %arg4[%c0_19, %c0_20, %c0_21, %c0_22], %73 {strides = array<i32>} : memref<4x2x8x8xf32, #tpu.memory_space<vmem>>, vector<4x2x8x8xf32>,
    %75 = tpu.concatenate %23, %38, %53, %68 in 2 : vector<2x8x8xf32>, vector<2x8x8xf32>, vector<2x8x8xf32>, vector<2x8x8xf32> -> vector<2x8x32xf32>
    %76 = arith.addf %75, %8 : vector<2x8x32xf32>
    %cst_23 = arith.constant dense<0.000000e+00> : vector<2x8xf32>
    %77 = vector.multi_reduction <add>, %76, %cst_23 [2] : vector<2x8x32xf32> to vector<2x8xf32>
    %78 = vector.shape_cast %77 : vector<2x8xf32> to vector<2x8x1xf32>
    %cst_24 = arith.constant 3.200000e+01 : f32
    %79 = vector.broadcast %cst_24 : f32 to vector<2x8x1xf32>
    %80 = arith.divf %78, %79 : vector<2x8x1xf32>
    %81 = vector.broadcast %80 : vector<2x8x1xf32> to vector<2x8x32xf32>
    %82 = arith.subf %76, %81 : vector<2x8x32xf32>
    %83 = arith.mulf %82, %82 : vector<2x8x32xf32>
    %cst_25 = arith.constant dense<0.000000e+00> : vector<2x8xf32>
    %84 = vector.multi_reduction <add>, %83, %cst_25 [2] : vector<2x8x32xf32> to vector<2x8xf32>
    %85 = vector.shape_cast %84 : vector<2x8xf32> to vector<2x8x1xf32>
    %cst_26 = arith.constant 3.100000e+01 : f32
    %86 = vector.broadcast %cst_26 : f32 to vector<2x8x1xf32>
    %87 = arith.divf %85, %86 : vector<2x8x1xf32>
    %88 = math.sqrt %87 : vector<2x8x1xf32>
    %c0_27 = arith.constant 0 : index
    %c0_28 = arith.constant 0 : index
    %89 = vector.load %arg2[%c0_27, %c0_28] : memref<2x32xf32, #tpu.memory_space<vmem>>, vector<1x32xf32>
    %90 = vector.shape_cast %89 : vector<1x32xf32> to vector<1x1x32xf32>
    %c1 = arith.constant 1 : index
    %c0_29 = arith.constant 0 : index
    %91 = vector.load %arg2[%c1, %c0_29] : memref<2x32xf32, #tpu.memory_space<vmem>>, vector<1x32xf32>
    %92 = vector.shape_cast %91 : vector<1x32xf32> to vector<1x1x32xf32>
    %93 = vector.broadcast %80 : vector<2x8x1xf32> to vector<2x8x32xf32>
    %94 = arith.subf %76, %93 : vector<2x8x32xf32>
    %cst_30 = arith.constant 1.000000e-03 : f32
    %95 = vector.broadcast %cst_30 : f32 to vector<2x8x1xf32>
    %96 = arith.addf %88, %95 : vector<2x8x1xf32>
    %97 = vector.broadcast %96 : vector<2x8x1xf32> to vector<2x8x32xf32>
    %98 = arith.divf %94, %97 : vector<2x8x32xf32>
    %99 = vector.broadcast %90 : vector<1x1x32xf32> to vector<2x8x32xf32>
    %100 = arith.mulf %98, %99 : vector<2x8x32xf32>
    %101 = vector.broadcast %92 : vector<1x1x32xf32> to vector<2x8x32xf32>
    %102 = arith.addf %100, %101 : vector<2x8x32xf32>
    %c0_31 = arith.constant 0 : index
    %c0_32 = arith.constant 0 : index
    %c0_33 = arith.constant 0 : index
    %103 = vector.load %arg3[%c0_31, %c0_32, %c0_33] : memref<2x8x32xf32, #tpu.memory_space<vmem>>, vector<2x8x32xf32>
    tpu.vector_store %arg3[%c0_31, %c0_32, %c0_33], %102 {strides = array<i32>} : memref<2x8x32xf32, #tpu.memory_space<vmem>>, vector<2x8x32xf32>,
    return
  }
}

</mosaic_0001>

<llo_original>
// kernel: multi_head_attention.1
$region0: #{multi_head_attention.1}
  #allocation0 [shape = 'u32[]', space=smem, size = 0x4, offset = 0x4, fixed_abs, tag = 'smem constant byte address 0x4 - core index']
  #allocation1 [shape = 'u32[144,128]{1,0:T(1,128)}', space=vmem, size = 0x12000, scoped, tag = 'internal scratch']
  %s0 = inlined_call_operand.vmem [shape: f32[16,96], index: 0, kind: input, shape index: {}]
  %s1 = inlined_call_operand.hbm [shape: f32[96,96], index: 1, kind: input, shape index: {}]
  %s2 = inlined_call_operand.vmem [shape: f32[2,32], index: 2, kind: input, shape index: {}]
  %s3 = inlined_call_operand.hbm [shape: f32[2,8,32], index: 3, kind: output, shape index: {0}]
  %s4 = inlined_call_operand.hbm [shape: f32[4,2,8,8], index: 4, kind: output, shape index: {1}]
  %5 = xla_tuple %s3, %s4
  %s6 = sld [smem:[#allocation0]]
  $region34: #{multi_head_attention.1} parent=0
    _
  %s8 = ssub.s32 1, %s6
  %s9 = scalar_select 0, %s8, %s6
  $region1: #{multi_head_attention.1} parent=0
    #allocation2 [shape = 'u8[49152]{0}', space=vmem, size = 0xc000, scoped, tag = 'input window, operand 1, single buffered']
    #allocation3 [shape = 's32[1]{0}', space=sflag, size = 0x4, scoped, tag = 'scoped memory for multi_head_attention.1']
    #allocation4 [shape = 's32[1]{0}', space=sflag, size = 0x4, scoped, tag = 'scoped memory for multi_head_attention.1']
    #allocation5 [shape = 'u8[8192]{0}', space=vmem, size = 0x2000, scoped, tag = 'output window, operand 0, single buffered']
    #allocation6 [shape = 'u8[32768]{0}', space=vmem, size = 0x8000, scoped, tag = 'output window, operand 1, single buffered']
    #allocation7 [shape = 's32[1]{0}', space=sflag, size = 0x4, scoped, tag = 'scoped memory for multi_head_attention.1']
    %10 = vsyncpa [#allocation3], 0
    %11 = vsyncpa [#allocation4], 0
    %12 = vsyncpa [#allocation7], 0
    // Predicated region
    $region2: #{multi_head_attention.1} parent=1 // pred_check
      _
    $region3: #{multi_head_attention.1} parent=1 // pred_check_branch
      %14 = sbr.rel (0) target = $region5
    $region4: #{multi_head_attention.1} parent=1 // pred_region
      _
    $region5: #{multi_head_attention.1} parent=1 // pred_fallthru
      _
    // Predicated region
    $region6: #{multi_head_attention.1} parent=1 // pred_check
      _
    $region7: #{multi_head_attention.1} parent=1 // pred_check_branch
      %16 = sbr.rel (0) target = $region9
    $region8: #{multi_head_attention.1} parent=1 // pred_region
      %s18 = ssub.s32 1536, 1536
      %19 = vsyncadd [#allocation3], %s18
      %s20 = sshll.u32 [#allocation2], 4
      %s21 = int_to_ptr.vmem [resolvable:$true] %s20
      %26 = dma.hbm_to_vmem [thread:$0]  %s1, 1536, %s21, [#allocation3], 128, 128, 8
    $region9: #{multi_head_attention.1} parent=1 // pred_fallthru
      _
    // Predicated region
    $region10: #{multi_head_attention.1} parent=1 // pred_check
      _
    $region11: #{multi_head_attention.1} parent=1 // pred_check_branch
      %28 = sbr.rel (0) target = $region13
    $region12: #{multi_head_attention.1} parent=1 // pred_region
      _
    $region13: #{multi_head_attention.1} parent=1 // pred_fallthru
      _
    // Predicated region
    $region14: #{multi_head_attention.1} parent=1 // pred_check
      _
    $region15: #{multi_head_attention.1} parent=1 // pred_check_branch
      %30 = sbr.rel (0) target = $region17
    $region16: #{multi_head_attention.1} parent=1 // pred_region
      %31 = dma.done [#allocation3], 1536
    $region17: #{multi_head_attention.1} parent=1 // pred_fallthru
      _
    %v32 = vld [vmem:[%s0] sm:$0xff]
    %v33 = vld [vmem:[%s0 + $0x8] sm:$0xff]
    %v34 = vld [vmem:[#allocation2] sm:$0xff]
    %v35 = vld [vmem:[#allocation2 + $0x8] sm:$0xff]
    %v36 = vld [vmem:[#allocation2 + $0x10] sm:$0xff]
    %v37 = vld [vmem:[#allocation2 + $0x18] sm:$0xff]
    %v38 = vld [vmem:[#allocation2 + $0x20] sm:$0xff]
    %v39 = vld [vmem:[#allocation2 + $0x28] sm:$0xff]
    %v40 = vld [vmem:[#allocation2 + $0x30] sm:$0xff]
    %v41 = vld [vmem:[#allocation2 + $0x38] sm:$0xff]
    %v42 = vld [vmem:[#allocation2 + $0x40] sm:$0xff]
    %v43 = vld [vmem:[#allocation2 + $0x48] sm:$0xff]
    %v44 = vld [vmem:[#allocation2 + $0x50] sm:$0xff]
    %v45 = vld [vmem:[#allocation2 + $0x58] sm:$0xff]
    %vm46 = vcmask 785408
    %v48 = vsel %vm46, %v32, 0
    %v51 = vsel %vm46, %v33, 0
    %53 = vmatprep.subr.mxu0 0.0
    %54 = vmatpush1.msra.mxu0 0.0
    %55 = vmatprep.subr.mxu0 0.0
    %56 = vmatpush1.msra.mxu0 0.0
    %57 = vmatprep.subr.mxu0 0.0
    %58 = vmatpush1.msra.mxu0 0.0
    %59 = vmatprep.subr.mxu0 0.0
    %60 = vmatpush1.msra.mxu0 0.0
    %61 = vmatprep.subr.mxu0 0.0
    %62 = vmatpush1.msra.mxu0 %v45
    %63 = vmatprep.subr.mxu0 0.0
    %64 = vmatpush1.msra.mxu0 %v44
    %65 = vmatprep.subr.mxu0 0.0
    %66 = vmatpush1.msra.mxu0 %v43
    %67 = vmatprep.subr.mxu0 0.0
    %68 = vmatpush1.msra.mxu0 %v42
    %69 = vmatprep.subr.mxu0 0.0
    %70 = vmatpush1.msra.mxu0 %v41
    %71 = vmatprep.subr.mxu0 0.0
    %72 = vmatpush1.msra.mxu0 %v40
    %73 = vmatprep.subr.mxu0 0.0
    %74 = vmatpush1.msra.mxu0 %v39
    %75 = vmatprep.subr.mxu0 0.0
    %76 = vmatpush1.msra.mxu0 %v38
    %77 = vmatprep.subr.mxu0 0.0
    %78 = vmatpush1.msra.mxu0 %v37
    %79 = vmatprep.subr.mxu0 0.0
    %80 = vmatpush1.msra.mxu0 %v36
    %81 = vmatprep.subr.mxu0 0.0
    %82 = vmatpush1.msra.mxu0 %v35
    %83 = vmatprep.subr.mxu0 0.0
    %84 = vmatpush1.msra.mxu0 %v34
    %85 = vmatprep.subr.mxu0 0.0
    %86 = vmatpush2.msra.mxu0 0.0
    %87 = vmatprep.subr.mxu0 0.0
    %88 = vmatpush2.msra.mxu0 0.0
    %89 = vmatprep.subr.mxu0 0.0
    %90 = vmatpush2.msra.mxu0 0.0
    %91 = vmatprep.subr.mxu0 0.0
    %92 = vmatpush2.msra.mxu0 0.0
    %93 = vmatprep.subr.mxu0 0.0
    %94 = vmatpush2.msra.mxu0 0.0
    %95 = vmatprep.subr.mxu0 0.0
    %96 = vmatpush2.msra.mxu0 0.0
    %97 = vmatprep.subr.mxu0 0.0
    %98 = vmatpush2.msra.mxu0 0.0
    %99 = vmatprep.subr.mxu0 0.0
    %100 = vmatpush2.msra.mxu0 0.0
    %101 = vmatprep.subr.mxu0 0.0
    %102 = vmatpush2.msra.mxu0 0.0
    %103 = vmatprep.subr.mxu0 0.0
    %104 = vmatpush2.msra.mxu0 0.0
    %105 = vmatprep.subr.mxu0 0.0
    %106 = vmatpush2.msra.mxu0 0.0
    %107 = vmatprep.subr.mxu0 0.0
    %108 = vmatpush2.msra.mxu0 0.0
    %109 = vmatprep.subr.mxu0 0.0
    %110 = vmatpush2.msra.mxu0 0.0
    %111 = vmatprep.subr.mxu0 0.0
    %112 = vmatpush2.msra.mxu0 0.0
    %113 = vmatprep.subr.mxu0 0.0
    %114 = vmatpush2.msra.mxu0 0.0
    %115 = vmatprep.subr.mxu0 0.0
    %116 = vmatpush2.msra.mxu0 0.0
    %117 = vmatprep.mubr.f32.mxu0 0.0
    %118 = vmatmul.mubr.f32.gmra.mxu0 %v48
    %v119 = vpop.f32.mrf.mxu0
    %v120 = vadd.f32 0.0, %v119
    %v121 = vpop.f32.mrf.mxu0
    %122 = vmatprep.mubr.f32.mxu0 0.0
    %123 = vmatmul.mubr.f32.gmra.mxu0 %v51
    %v124 = vpop.f32.mrf.mxu0
    %v125 = vadd.f32 0.0, %v124
    %v126 = vpop.f32.mrf.mxu0
    %127 = vdwg.mxu0
    %129 = vrot.lane.b32.xlu0 %v120, 96
    %v130 = vpop.permute.xlu0 %129
    %vm131 = vcmask 64512
    %v132 = vsel %vm131, %v120, 0
    %v134 = vsel %vm131, %v130, 0
    %136 = vmatprep.subr.mxu0 0.0
    %137 = vmatpush1.xpose.msra.mxu0 0.0
    %138 = vmatprep.subr.mxu0 0.0
    %139 = vmatpush1.xpose.msra.mxu0 0.0
    %140 = vmatprep.subr.mxu0 0.0
    %141 = vmatpush1.xpose.msra.mxu0 0.0
    %142 = vmatprep.subr.mxu0 0.0
    %143 = vmatpush1.xpose.msra.mxu0 0.0
    %144 = vmatprep.subr.mxu0 0.0
    %145 = vmatpush1.xpose.msra.mxu0 0.0
    %146 = vmatprep.subr.mxu0 0.0
    %147 = vmatpush1.xpose.msra.mxu0 0.0
    %148 = vmatprep.subr.mxu0 0.0
    %149 = vmatpush1.xpose.msra.mxu0 0.0
    %150 = vmatprep.subr.mxu0 0.0
    %151 = vmatpush1.xpose.msra.mxu0 0.0
    %152 = vmatprep.subr.mxu0 0.0
    %153 = vmatpush1.xpose.msra.mxu0 0.0
    %154 = vmatprep.subr.mxu0 0.0
    %155 = vmatpush1.xpose.msra.mxu0 0.0
    %156 = vmatprep.subr.mxu0 0.0
    %157 = vmatpush1.xpose.msra.mxu0 0.0
    %158 = vmatprep.subr.mxu0 0.0
    %159 = vmatpush1.xpose.msra.mxu0 0.0
    %160 = vmatprep.subr.mxu0 0.0
    %161 = vmatpush1.xpose.msra.mxu0 0.0
    %162 = vmatprep.subr.mxu0 0.0
    %163 = vmatpush1.xpose.msra.mxu0 0.0
    %164 = vmatprep.subr.mxu0 0.0
    %165 = vmatpush1.xpose.msra.mxu0 0.0
    %166 = vmatprep.subr.mxu0 0.0
    %167 = vmatpush1.xpose.msra.mxu0 %v134
    %168 = vmatprep.subr.mxu0 0.0
    %169 = vmatpush2.xpose.msra.mxu0 0.0
    %170 = vmatprep.subr.mxu0 0.0
    %171 = vmatpush2.xpose.msra.mxu0 0.0
    %172 = vmatprep.subr.mxu0 0.0
    %173 = vmatpush2.xpose.msra.mxu0 0.0
    %174 = vmatprep.subr.mxu0 0.0
    %175 = vmatpush2.xpose.msra.mxu0 0.0
    %176 = vmatprep.subr.mxu0 0.0
    %177 = vmatpush2.xpose.msra.mxu0 0.0
    %178 = vmatprep.subr.mxu0 0.0
    %179 = vmatpush2.xpose.msra.mxu0 0.0
    %180 = vmatprep.subr.mxu0 0.0
    %181 = vmatpush2.xpose.msra.mxu0 0.0
    %182 = vmatprep.subr.mxu0 0.0
    %183 = vmatpush2.xpose.msra.mxu0 0.0
    %184 = vmatprep.subr.mxu0 0.0
    %185 = vmatpush2.xpose.msra.mxu0 0.0
    %186 = vmatprep.subr.mxu0 0.0
    %187 = vmatpush2.xpose.msra.mxu0 0.0
    %188 = vmatprep.subr.mxu0 0.0
    %189 = vmatpush2.xpose.msra.mxu0 0.0
    %190 = vmatprep.subr.mxu0 0.0
    %191 = vmatpush2.xpose.msra.mxu0 0.0
    %192 = vmatprep.subr.mxu0 0.0
    %193 = vmatpush2.xpose.msra.mxu0 0.0
    %194 = vmatprep.subr.mxu0 0.0
    %195 = vmatpush2.xpose.msra.mxu0 0.0
    %196 = vmatprep.subr.mxu0 0.0
    %197 = vmatpush2.xpose.msra.mxu0 0.0
    %198 = vmatprep.subr.mxu0 0.0
    %199 = vmatpush2.xpose.msra.mxu0 0.0
    %200 = vmatprep.mubr.f32.mxu0 0.0
    %201 = vmatmul.mubr.f32.gmra.mxu0 %v132
    %v202 = vpop.f32.mrf.mxu0
    %v203 = vadd.f32 0.0, %v202
    %v204 = vpop.f32.mrf.mxu0
    %205 = vdwg.mxu0
    %207 = vrot.lane.b32.xlu0 %v125, 96
    %v208 = vpop.permute.xlu0 %207
    %v209 = vsel %vm131, %v125, 0
    %v211 = vsel %vm131, %v208, 0
    %213 = vmatprep.subr.mxu0 0.0
    %214 = vmatpush1.xpose.msra.mxu0 0.0
    %215 = vmatprep.subr.mxu0 0.0
    %216 = vmatpush1.xpose.msra.mxu0 0.0
    %217 = vmatprep.subr.mxu0 0.0
    %218 = vmatpush1.xpose.msra.mxu0 0.0
    %219 = vmatprep.subr.mxu0 0.0
    %220 = vmatpush1.xpose.msra.mxu0 0.0
    %221 = vmatprep.subr.mxu0 0.0
    %222 = vmatpush1.xpose.msra.mxu0 0.0
    %223 = vmatprep.subr.mxu0 0.0
    %224 = vmatpush1.xpose.msra.mxu0 0.0
    %225 = vmatprep.subr.mxu0 0.0
    %226 = vmatpush1.xpose.msra.mxu0 0.0
    %227 = vmatprep.subr.mxu0 0.0
    %228 = vmatpush1.xpose.msra.mxu0 0.0
    %229 = vmatprep.subr.mxu0 0.0
    %230 = vmatpush1.xpose.msra.mxu0 0.0
    %231 = vmatprep.subr.mxu0 0.0
    %232 = vmatpush1.xpose.msra.mxu0 0.0
    %233 = vmatprep.subr.mxu0 0.0
    %234 = vmatpush1.xpose.msra.mxu0 0.0
    %235 = vmatprep.subr.mxu0 0.0
    %236 = vmatpush1.xpose.msra.mxu0 0.0
    %237 = vmatprep.subr.mxu0 0.0
    %238 = vmatpush1.xpose.msra.mxu0 0.0
    %239 = vmatprep.subr.mxu0 0.0
    %240 = vmatpush1.xpose.msra.mxu0 0.0
    %241 = vmatprep.subr.mxu0 0.0
    %242 = vmatpush1.xpose.msra.mxu0 0.0
    %243 = vmatprep.subr.mxu0 0.0
    %244 = vmatpush1.xpose.msra.mxu0 %v211
    %245 = vmatprep.subr.mxu0 0.0
    %246 = vmatpush2.xpose.msra.mxu0 0.0
    %247 = vmatprep.subr.mxu0 0.0
    %248 = vmatpush2.xpose.msra.mxu0 0.0
    %249 = vmatprep.subr.mxu0 0.0
    %250 = vmatpush2.xpose.msra.mxu0 0.0
    %251 = vmatprep.subr.mxu0 0.0
    %252 = vmatpush2.xpose.msra.mxu0 0.0
    %253 = vmatprep.subr.mxu0 0.0
    %254 = vmatpush2.xpose.msra.mxu0 0.0
    %255 = vmatprep.subr.mxu0 0.0
    %256 = vmatpush2.xpose.msra.mxu0 0.0
    %257 = vmatprep.subr.mxu0 0.0
    %258 = vmatpush2.xpose.msra.mxu0 0.0
    %259 = vmatprep.subr.mxu0 0.0
    %260 = vmatpush2.xpose.msra.mxu0 0.0
    %261 = vmatprep.subr.mxu0 0.0
    %262 = vmatpush2.xpose.msra.mxu0 0.0
    %263 = vmatprep.subr.mxu0 0.0
    %264 = vmatpush2.xpose.msra.mxu0 0.0
    %265 = vmatprep.subr.mxu0 0.0
    %266 = vmatpush2.xpose.msra.mxu0 0.0
    %267 = vmatprep.subr.mxu0 0.0
    %268 = vmatpush2.xpose.msra.mxu0 0.0
    %269 = vmatprep.subr.mxu0 0.0
    %270 = vmatpush2.xpose.msra.mxu0 0.0
    %271 = vmatprep.subr.mxu0 0.0
    %272 = vmatpush2.xpose.msra.mxu0 0.0
    %273 = vmatprep.subr.mxu0 0.0
    %274 = vmatpush2.xpose.msra.mxu0 0.0
    %275 = vmatprep.subr.mxu0 0.0
    %276 = vmatpush2.xpose.msra.mxu0 0.0
    %277 = vmatprep.mubr.f32.mxu0 0.0
    %278 = vmatmul.mubr.f32.gmra.mxu0 %v209
    %v279 = vpop.f32.mrf.mxu0
    %v280 = vadd.f32 0.0, %v279
    %v281 = vpop.f32.mrf.mxu0
    %282 = vdwg.mxu0
    %v283 = vsel %vm131, %v203, -inf
    %284 = vmax.xlane.f32.xlu0 %v283
    %v285 = vpop.xlane.xlu0 %284
    %v286 = vsel %vm131, %v280, -inf
    %287 = vmax.xlane.f32.xlu0 %v286
    %v288 = vpop.xlane.xlu0 %287
    %v289 = vsub.f32 %v203, %v285
    %v290 = vsub.f32 %v280, %v288
    %v291 = vmul.f32 %v289, 1.442695
    %v292 = vpow.pop %v291
    %v293 = vmul.f32 %v290, 1.442695
    %v294 = vpow.pop %v293
    %v295 = vsel %vm131, %v292, 0.0
    %296 = vadd.xlane.f32.xlu0 %v295
    %v297 = vpop.xlane.xlu0 %296
    %v298 = vsel %vm131, %v294, 0.0
    %299 = vadd.xlane.f32.xlu0 %v298
    %v300 = vpop.xlane.xlu0 %299
    %v301 = vrcp.pop %v297
    %v302 = vrcp.pop %v300
    %v303 = vmul.f32 %v292, %v301
    %v304 = vmul.f32 %v294, %v302
    %305 = vrot.lane.b32.xlu0 %v120, 64
    %v306 = vpop.permute.xlu0 %305
    %v309 = vsel %vm131, %v303, 0
    %311 = vmatprep.subr.mxu0 0.0
    %312 = vmatpush1.msra.mxu0 0.0
    %313 = vmatprep.subr.mxu0 0.0
    %314 = vmatpush1.msra.mxu0 0.0
    %315 = vmatprep.subr.mxu0 0.0
    %316 = vmatpush1.msra.mxu0 0.0
    %317 = vmatprep.subr.mxu0 0.0
    %318 = vmatpush1.msra.mxu0 0.0
    %319 = vmatprep.subr.mxu0 0.0
    %320 = vmatpush1.msra.mxu0 0.0
    %321 = vmatprep.subr.mxu0 0.0
    %322 = vmatpush1.msra.mxu0 0.0
    %323 = vmatprep.subr.mxu0 0.0
    %324 = vmatpush1.msra.mxu0 0.0
    %325 = vmatprep.subr.mxu0 0.0
    %326 = vmatpush1.msra.mxu0 0.0
    %327 = vmatprep.subr.mxu0 0.0
    %328 = vmatpush1.msra.mxu0 0.0
    %329 = vmatprep.subr.mxu0 0.0
    %330 = vmatpush1.msra.mxu0 0.0
    %331 = vmatprep.subr.mxu0 0.0
    %332 = vmatpush1.msra.mxu0 0.0
    %333 = vmatprep.subr.mxu0 0.0
    %334 = vmatpush1.msra.mxu0 0.0
    %335 = vmatprep.subr.mxu0 0.0
    %336 = vmatpush1.msra.mxu0 0.0
    %337 = vmatprep.subr.mxu0 0.0
    %338 = vmatpush1.msra.mxu0 0.0
    %339 = vmatprep.subr.mxu0 0.0
    %340 = vmatpush1.msra.mxu0 0.0
    %341 = vmatprep.subr.mxu0 0.0
    %342 = vmatpush1.msra.mxu0 %v306
    %343 = vmatprep.subr.mxu0 0.0
    %344 = vmatpush2.msra.mxu0 0.0
    %345 = vmatprep.subr.mxu0 0.0
    %346 = vmatpush2.msra.mxu0 0.0
    %347 = vmatprep.subr.mxu0 0.0
    %348 = vmatpush2.msra.mxu0 0.0
    %349 = vmatprep.subr.mxu0 0.0
    %350 = vmatpush2.msra.mxu0 0.0
    %351 = vmatprep.subr.mxu0 0.0
    %352 = vmatpush2.msra.mxu0 0.0
    %353 = vmatprep.subr.mxu0 0.0
    %354 = vmatpush2.msra.mxu0 0.0
    %355 = vmatprep.subr.mxu0 0.0
    %356 = vmatpush2.msra.mxu0 0.0
    %357 = vmatprep.subr.mxu0 0.0
    %358 = vmatpush2.msra.mxu0 0.0
    %359 = vmatprep.subr.mxu0 0.0
    %360 = vmatpush2.msra.mxu0 0.0
    %361 = vmatprep.subr.mxu0 0.0
    %362 = vmatpush2.msra.mxu0 0.0
    %363 = vmatprep.subr.mxu0 0.0
    %364 = vmatpush2.msra.mxu0 0.0
    %365 = vmatprep.subr.mxu0 0.0
    %366 = vmatpush2.msra.mxu0 0.0
    %367 = vmatprep.subr.mxu0 0.0
    %368 = vmatpush2.msra.mxu0 0.0
    %369 = vmatprep.subr.mxu0 0.0
    %370 = vmatpush2.msra.mxu0 0.0
    %371 = vmatprep.subr.mxu0 0.0
    %372 = vmatpush2.msra.mxu0 0.0
    %373 = vmatprep.subr.mxu0 0.0
    %374 = vmatpush2.msra.mxu0 0.0
    %375 = vmatprep.mubr.f32.mxu0 0.0
    %376 = vmatmul.mubr.f32.gmra.mxu0 %v309
    %v377 = vpop.f32.mrf.mxu0
    %v378 = vadd.f32 0.0, %v377
    %v379 = vpop.f32.mrf.mxu0
    %380 = vdwg.mxu0
    %381 = vrot.lane.b32.xlu0 %v125, 64
    %v382 = vpop.permute.xlu0 %381
    %v385 = vsel %vm131, %v304, 0
    %387 = vmatprep.subr.mxu0 0.0
    %388 = vmatpush1.msra.mxu0 0.0
    %389 = vmatprep.subr.mxu0 0.0
    %390 = vmatpush1.msra.mxu0 0.0
    %391 = vmatprep.subr.mxu0 0.0
    %392 = vmatpush1.msra.mxu0 0.0
    %393 = vmatprep.subr.mxu0 0.0
    %394 = vmatpush1.msra.mxu0 0.0
    %395 = vmatprep.subr.mxu0 0.0
    %396 = vmatpush1.msra.mxu0 0.0
    %397 = vmatprep.subr.mxu0 0.0
    %398 = vmatpush1.msra.mxu0 0.0
    %399 = vmatprep.subr.mxu0 0.0
    %400 = vmatpush1.msra.mxu0 0.0
    %401 = vmatprep.subr.mxu0 0.0
    %402 = vmatpush1.msra.mxu0 0.0
    %403 = vmatprep.subr.mxu0 0.0
    %404 = vmatpush1.msra.mxu0 0.0
    %405 = vmatprep.subr.mxu0 0.0
    %406 = vmatpush1.msra.mxu0 0.0
    %407 = vmatprep.subr.mxu0 0.0
    %408 = vmatpush1.msra.mxu0 0.0
    %409 = vmatprep.subr.mxu0 0.0
    %410 = vmatpush1.msra.mxu0 0.0
    %411 = vmatprep.subr.mxu0 0.0
    %412 = vmatpush1.msra.mxu0 0.0
    %413 = vmatprep.subr.mxu0 0.0
    %414 = vmatpush1.msra.mxu0 0.0
    %415 = vmatprep.subr.mxu0 0.0
    %416 = vmatpush1.msra.mxu0 0.0
    %417 = vmatprep.subr.mxu0 0.0
    %418 = vmatpush1.msra.mxu0 %v382
    %419 = vmatprep.subr.mxu0 0.0
    %420 = vmatpush2.msra.mxu0 0.0
    %421 = vmatprep.subr.mxu0 0.0
    %422 = vmatpush2.msra.mxu0 0.0
    %423 = vmatprep.subr.mxu0 0.0
    %424 = vmatpush2.msra.mxu0 0.0
    %425 = vmatprep.subr.mxu0 0.0
    %426 = vmatpush2.msra.mxu0 0.0
    %427 = vmatprep.subr.mxu0 0.0
    %428 = vmatpush2.msra.mxu0 0.0
    %429 = vmatprep.subr.mxu0 0.0
    %430 = vmatpush2.msra.mxu0 0.0
    %431 = vmatprep.subr.mxu0 0.0
    %432 = vmatpush2.msra.mxu0 0.0
    %433 = vmatprep.subr.mxu0 0.0
    %434 = vmatpush2.msra.mxu0 0.0
    %435 = vmatprep.subr.mxu0 0.0
    %436 = vmatpush2.msra.mxu0 0.0
    %437 = vmatprep.subr.mxu0 0.0
    %438 = vmatpush2.msra.mxu0 0.0
    %439 = vmatprep.subr.mxu0 0.0
    %440 = vmatpush2.msra.mxu0 0.0
    %441 = vmatprep.subr.mxu0 0.0
    %442 = vmatpush2.msra.mxu0 0.0
    %443 = vmatprep.subr.mxu0 0.0
    %444 = vmatpush2.msra.mxu0 0.0
    %445 = vmatprep.subr.mxu0 0.0
    %446 = vmatpush2.msra.mxu0 0.0
    %447 = vmatprep.subr.mxu0 0.0
    %448 = vmatpush2.msra.mxu0 0.0
    %449 = vmatprep.subr.mxu0 0.0
    %450 = vmatpush2.msra.mxu0 0.0
    %451 = vmatprep.mubr.f32.mxu0 0.0
    %452 = vmatmul.mubr.f32.gmra.mxu0 %v385
    %v453 = vpop.f32.mrf.mxu0
    %v454 = vadd.f32 0.0, %v453
    %v455 = vpop.f32.mrf.mxu0
    %456 = vdwg.mxu0
    %457 = vrot.lane.b32.xlu0 %v120, 120
    %v458 = vpop.permute.xlu0 %457
    %459 = vrot.lane.b32.xlu0 %v120, 88
    %v460 = vpop.permute.xlu0 %459
    %v461 = vsel %vm131, %v458, 0
    %v463 = vsel %vm131, %v460, 0
    %465 = vmatprep.subr.mxu0 0.0
    %466 = vmatpush1.xpose.msra.mxu0 0.0
    %467 = vmatprep.subr.mxu0 0.0
    %468 = vmatpush1.xpose.msra.mxu0 0.0
    %469 = vmatprep.subr.mxu0 0.0
    %470 = vmatpush1.xpose.msra.mxu0 0.0
    %471 = vmatprep.subr.mxu0 0.0
    %472 = vmatpush1.xpose.msra.mxu0 0.0
    %473 = vmatprep.subr.mxu0 0.0
    %474 = vmatpush1.xpose.msra.mxu0 0.0
    %475 = vmatprep.subr.mxu0 0.0
    %476 = vmatpush1.xpose.msra.mxu0 0.0
    %477 = vmatprep.subr.mxu0 0.0
    %478 = vmatpush1.xpose.msra.mxu0 0.0
    %479 = vmatprep.subr.mxu0 0.0
    %480 = vmatpush1.xpose.msra.mxu0 0.0
    %481 = vmatprep.subr.mxu0 0.0
    %482 = vmatpush1.xpose.msra.mxu0 0.0
    %483 = vmatprep.subr.mxu0 0.0
    %484 = vmatpush1.xpose.msra.mxu0 0.0
    %485 = vmatprep.subr.mxu0 0.0
    %486 = vmatpush1.xpose.msra.mxu0 0.0
    %487 = vmatprep.subr.mxu0 0.0
    %488 = vmatpush1.xpose.msra.mxu0 0.0
    %489 = vmatprep.subr.mxu0 0.0
    %490 = vmatpush1.xpose.msra.mxu0 0.0
    %491 = vmatprep.subr.mxu0 0.0
    %492 = vmatpush1.xpose.msra.mxu0 0.0
    %493 = vmatprep.subr.mxu0 0.0
    %494 = vmatpush1.xpose.msra.mxu0 0.0
    %495 = vmatprep.subr.mxu0 0.0
    %496 = vmatpush1.xpose.msra.mxu0 %v463
    %497 = vmatprep.subr.mxu0 0.0
    %498 = vmatpush2.xpose.msra.mxu0 0.0
    %499 = vmatprep.subr.mxu0 0.0
    %500 = vmatpush2.xpose.msra.mxu0 0.0
    %501 = vmatprep.subr.mxu0 0.0
    %502 = vmatpush2.xpose.msra.mxu0 0.0
    %503 = vmatprep.subr.mxu0 0.0
    %504 = vmatpush2.xpose.msra.mxu0 0.0
    %505 = vmatprep.subr.mxu0 0.0
    %506 = vmatpush2.xpose.msra.mxu0 0.0
    %507 = vmatprep.subr.mxu0 0.0
    %508 = vmatpush2.xpose.msra.mxu0 0.0
    %509 = vmatprep.subr.mxu0 0.0
    %510 = vmatpush2.xpose.msra.mxu0 0.0
    %511 = vmatprep.subr.mxu0 0.0
    %512 = vmatpush2.xpose.msra.mxu0 0.0
    %513 = vmatprep.subr.mxu0 0.0
    %514 = vmatpush2.xpose.msra.mxu0 0.0
    %515 = vmatprep.subr.mxu0 0.0
    %516 = vmatpush2.xpose.msra.mxu0 0.0
    %517 = vmatprep.subr.mxu0 0.0
    %518 = vmatpush2.xpose.msra.mxu0 0.0
    %519 = vmatprep.subr.mxu0 0.0
    %520 = vmatpush2.xpose.msra.mxu0 0.0
    %521 = vmatprep.subr.mxu0 0.0
    %522 = vmatpush2.xpose.msra.mxu0 0.0
    %523 = vmatprep.subr.mxu0 0.0
    %524 = vmatpush2.xpose.msra.mxu0 0.0
    %525 = vmatprep.subr.mxu0 0.0
    %526 = vmatpush2.xpose.msra.mxu0 0.0
    %527 = vmatprep.subr.mxu0 0.0
    %528 = vmatpush2.xpose.msra.mxu0 0.0
    %529 = vmatprep.mubr.f32.mxu0 0.0
    %530 = vmatmul.mubr.f32.gmra.mxu0 %v461
    %v531 = vpop.f32.mrf.mxu0
    %v532 = vadd.f32 0.0, %v531
    %v533 = vpop.f32.mrf.mxu0
    %534 = vdwg.mxu0
    %535 = vrot.lane.b32.xlu0 %v125, 120
    %v536 = vpop.permute.xlu0 %535
    %537 = vrot.lane.b32.xlu0 %v125, 88
    %v538 = vpop.permute.xlu0 %537
    %v539 = vsel %vm131, %v536, 0
    %v541 = vsel %vm131, %v538, 0
    %543 = vmatprep.subr.mxu0 0.0
    %544 = vmatpush1.xpose.msra.mxu0 0.0
    %545 = vmatprep.subr.mxu0 0.0
    %546 = vmatpush1.xpose.msra.mxu0 0.0
    %547 = vmatprep.subr.mxu0 0.0
    %548 = vmatpush1.xpose.msra.mxu0 0.0
    %549 = vmatprep.subr.mxu0 0.0
    %550 = vmatpush1.xpose.msra.mxu0 0.0
    %551 = vmatprep.subr.mxu0 0.0
    %552 = vmatpush1.xpose.msra.mxu0 0.0
    %553 = vmatprep.subr.mxu0 0.0
    %554 = vmatpush1.xpose.msra.mxu0 0.0
    %555 = vmatprep.subr.mxu0 0.0
    %556 = vmatpush1.xpose.msra.mxu0 0.0
    %557 = vmatprep.subr.mxu0 0.0
    %558 = vmatpush1.xpose.msra.mxu0 0.0
    %559 = vmatprep.subr.mxu0 0.0
    %560 = vmatpush1.xpose.msra.mxu0 0.0
    %561 = vmatprep.subr.mxu0 0.0
    %562 = vmatpush1.xpose.msra.mxu0 0.0
    %563 = vmatprep.subr.mxu0 0.0
    %564 = vmatpush1.xpose.msra.mxu0 0.0
    %565 = vmatprep.subr.mxu0 0.0
    %566 = vmatpush1.xpose.msra.mxu0 0.0
    %567 = vmatprep.subr.mxu0 0.0
    %568 = vmatpush1.xpose.msra.mxu0 0.0
    %569 = vmatprep.subr.mxu0 0.0
    %570 = vmatpush1.xpose.msra.mxu0 0.0
    %571 = vmatprep.subr.mxu0 0.0
    %572 = vmatpush1.xpose.msra.mxu0 0.0
    %573 = vmatprep.subr.mxu0 0.0
    %574 = vmatpush1.xpose.msra.mxu0 %v541
    %575 = vmatprep.subr.mxu0 0.0
    %576 = vmatpush2.xpose.msra.mxu0 0.0
    %577 = vmatprep.subr.mxu0 0.0
    %578 = vmatpush2.xpose.msra.mxu0 0.0
    %579 = vmatprep.subr.mxu0 0.0
    %580 = vmatpush2.xpose.msra.mxu0 0.0
    %581 = vmatprep.subr.mxu0 0.0
    %582 = vmatpush2.xpose.msra.mxu0 0.0
    %583 = vmatprep.subr.mxu0 0.0
    %584 = vmatpush2.xpose.msra.mxu0 0.0
    %585 = vmatprep.subr.mxu0 0.0
    %586 = vmatpush2.xpose.msra.mxu0 0.0
    %587 = vmatprep.subr.mxu0 0.0
    %588 = vmatpush2.xpose.msra.mxu0 0.0
    %589 = vmatprep.subr.mxu0 0.0
    %590 = vmatpush2.xpose.msra.mxu0 0.0
    %591 = vmatprep.subr.mxu0 0.0
    %592 = vmatpush2.xpose.msra.mxu0 0.0
    %593 = vmatprep.subr.mxu0 0.0
    %594 = vmatpush2.xpose.msra.mxu0 0.0
    %595 = vmatprep.subr.mxu0 0.0
    %596 = vmatpush2.xpose.msra.mxu0 0.0
    %597 = vmatprep.subr.mxu0 0.0
    %598 = vmatpush2.xpose.msra.mxu0 0.0
    %599 = vmatprep.subr.mxu0 0.0
    %600 = vmatpush2.xpose.msra.mxu0 0.0
    %601 = vmatprep.subr.mxu0 0.0
    %602 = vmatpush2.xpose.msra.mxu0 0.0
    %603 = vmatprep.subr.mxu0 0.0
    %604 = vmatpush2.xpose.msra.mxu0 0.0
    %605 = vmatprep.subr.mxu0 0.0
    %606 = vmatpush2.xpose.msra.mxu0 0.0
    %607 = vmatprep.mubr.f32.mxu0 0.0
    %608 = vmatmul.mubr.f32.gmra.mxu0 %v539
    %v609 = vpop.f32.mrf.mxu0
    %v610 = vadd.f32 0.0, %v609
    %v611 = vpop.f32.mrf.mxu0
    %612 = vdwg.mxu0
    %v613 = vsel %vm131, %v532, -inf
    %614 = vmax.xlane.f32.xlu0 %v613
    %v615 = vpop.xlane.xlu0 %614
    %v616 = vsel %vm131, %v610, -inf
    %617 = vmax.xlane.f32.xlu0 %v616
    %v618 = vpop.xlane.xlu0 %617
    %v619 = vsub.f32 %v532, %v615
    %v620 = vsub.f32 %v610, %v618
    %v621 = vmul.f32 %v619, 1.442695
    %v622 = vpow.pop %v621
    %v623 = vmul.f32 %v620, 1.442695
    %v624 = vpow.pop %v623
    %v625 = vsel %vm131, %v622, 0.0
    %626 = vadd.xlane.f32.xlu0 %v625
    %v627 = vpop.xlane.xlu0 %626
    %v628 = vsel %vm131, %v624, 0.0
    %629 = vadd.xlane.f32.xlu0 %v628
    %v630 = vpop.xlane.xlu0 %629
    %v631 = vrcp.pop %v627
    %v632 = vrcp.pop %v630
    %v633 = vmul.f32 %v622, %v631
    %v634 = vmul.f32 %v624, %v632
    %635 = vrot.lane.b32.xlu0 %v120, 56
    %v636 = vpop.permute.xlu0 %635
    %v639 = vsel %vm131, %v633, 0
    %641 = vmatprep.subr.mxu0 0.0
    %642 = vmatpush1.msra.mxu0 0.0
    %643 = vmatprep.subr.mxu0 0.0
    %644 = vmatpush1.msra.mxu0 0.0
    %645 = vmatprep.subr.mxu0 0.0
    %646 = vmatpush1.msra.mxu0 0.0
    %647 = vmatprep.subr.mxu0 0.0
    %648 = vmatpush1.msra.mxu0 0.0
    %649 = vmatprep.subr.mxu0 0.0
    %650 = vmatpush1.msra.mxu0 0.0
    %651 = vmatprep.subr.mxu0 0.0
    %652 = vmatpush1.msra.mxu0 0.0
    %653 = vmatprep.subr.mxu0 0.0
    %654 = vmatpush1.msra.mxu0 0.0
    %655 = vmatprep.subr.mxu0 0.0
    %656 = vmatpush1.msra.mxu0 0.0
    %657 = vmatprep.subr.mxu0 0.0
    %658 = vmatpush1.msra.mxu0 0.0
    %659 = vmatprep.subr.mxu0 0.0
    %660 = vmatpush1.msra.mxu0 0.0
    %661 = vmatprep.subr.mxu0 0.0
    %662 = vmatpush1.msra.mxu0 0.0
    %663 = vmatprep.subr.mxu0 0.0
    %664 = vmatpush1.msra.mxu0 0.0
    %665 = vmatprep.subr.mxu0 0.0
    %666 = vmatpush1.msra.mxu0 0.0
    %667 = vmatprep.subr.mxu0 0.0
    %668 = vmatpush1.msra.mxu0 0.0
    %669 = vmatprep.subr.mxu0 0.0
    %670 = vmatpush1.msra.mxu0 0.0
    %671 = vmatprep.subr.mxu0 0.0
    %672 = vmatpush1.msra.mxu0 %v636
    %673 = vmatprep.subr.mxu0 0.0
    %674 = vmatpush2.msra.mxu0 0.0
    %675 = vmatprep.subr.mxu0 0.0
    %676 = vmatpush2.msra.mxu0 0.0
    %677 = vmatprep.subr.mxu0 0.0
    %678 = vmatpush2.msra.mxu0 0.0
    %679 = vmatprep.subr.mxu0 0.0
    %680 = vmatpush2.msra.mxu0 0.0
    %681 = vmatprep.subr.mxu0 0.0
    %682 = vmatpush2.msra.mxu0 0.0
    %683 = vmatprep.subr.mxu0 0.0
    %684 = vmatpush2.msra.mxu0 0.0
    %685 = vmatprep.subr.mxu0 0.0
    %686 = vmatpush2.msra.mxu0 0.0
    %687 = vmatprep.subr.mxu0 0.0
    %688 = vmatpush2.msra.mxu0 0.0
    %689 = vmatprep.subr.mxu0 0.0
    %690 = vmatpush2.msra.mxu0 0.0
    %691 = vmatprep.subr.mxu0 0.0
    %692 = vmatpush2.msra.mxu0 0.0
    %693 = vmatprep.subr.mxu0 0.0
    %694 = vmatpush2.msra.mxu0 0.0
    %695 = vmatprep.subr.mxu0 0.0
    %696 = vmatpush2.msra.mxu0 0.0
    %697 = vmatprep.subr.mxu0 0.0
    %698 = vmatpush2.msra.mxu0 0.0
    %699 = vmatprep.subr.mxu0 0.0
    %700 = vmatpush2.msra.mxu0 0.0
    %701 = vmatprep.subr.mxu0 0.0
    %702 = vmatpush2.msra.mxu0 0.0
    %703 = vmatprep.subr.mxu0 0.0
    %704 = vmatpush2.msra.mxu0 0.0
    %705 = vmatprep.mubr.f32.mxu0 0.0
    %706 = vmatmul.mubr.f32.gmra.mxu0 %v639
    %v707 = vpop.f32.mrf.mxu0
    %v708 = vadd.f32 0.0, %v707
    %v709 = vpop.f32.mrf.mxu0
    %710 = vdwg.mxu0
    %711 = vrot.lane.b32.xlu0 %v125, 56
    %v712 = vpop.permute.xlu0 %711
    %v715 = vsel %vm131, %v634, 0
    %717 = vmatprep.subr.mxu0 0.0
    %718 = vmatpush1.msra.mxu0 0.0
    %719 = vmatprep.subr.mxu0 0.0
    %720 = vmatpush1.msra.mxu0 0.0
    %721 = vmatprep.subr.mxu0 0.0
    %722 = vmatpush1.msra.mxu0 0.0
    %723 = vmatprep.subr.mxu0 0.0
    %724 = vmatpush1.msra.mxu0 0.0
    %725 = vmatprep.subr.mxu0 0.0
    %726 = vmatpush1.msra.mxu0 0.0
    %727 = vmatprep.subr.mxu0 0.0
    %728 = vmatpush1.msra.mxu0 0.0
    %729 = vmatprep.subr.mxu0 0.0
    %730 = vmatpush1.msra.mxu0 0.0
    %731 = vmatprep.subr.mxu0 0.0
    %732 = vmatpush1.msra.mxu0 0.0
    %733 = vmatprep.subr.mxu0 0.0
    %734 = vmatpush1.msra.mxu0 0.0
    %735 = vmatprep.subr.mxu0 0.0
    %736 = vmatpush1.msra.mxu0 0.0
    %737 = vmatprep.subr.mxu0 0.0
    %738 = vmatpush1.msra.mxu0 0.0
    %739 = vmatprep.subr.mxu0 0.0
    %740 = vmatpush1.msra.mxu0 0.0
    %741 = vmatprep.subr.mxu0 0.0
    %742 = vmatpush1.msra.mxu0 0.0
    %743 = vmatprep.subr.mxu0 0.0
    %744 = vmatpush1.msra.mxu0 0.0
    %745 = vmatprep.subr.mxu0 0.0
    %746 = vmatpush1.msra.mxu0 0.0
    %747 = vmatprep.subr.mxu0 0.0
    %748 = vmatpush1.msra.mxu0 %v712
    %749 = vmatprep.subr.mxu0 0.0
    %750 = vmatpush2.msra.mxu0 0.0
    %751 = vmatprep.subr.mxu0 0.0
    %752 = vmatpush2.msra.mxu0 0.0
    %753 = vmatprep.subr.mxu0 0.0
    %754 = vmatpush2.msra.mxu0 0.0
    %755 = vmatprep.subr.mxu0 0.0
    %756 = vmatpush2.msra.mxu0 0.0
    %757 = vmatprep.subr.mxu0 0.0
    %758 = vmatpush2.msra.mxu0 0.0
    %759 = vmatprep.subr.mxu0 0.0
    %760 = vmatpush2.msra.mxu0 0.0
    %761 = vmatprep.subr.mxu0 0.0
    %762 = vmatpush2.msra.mxu0 0.0
    %763 = vmatprep.subr.mxu0 0.0
    %764 = vmatpush2.msra.mxu0 0.0
    %765 = vmatprep.subr.mxu0 0.0
    %766 = vmatpush2.msra.mxu0 0.0
    %767 = vmatprep.subr.mxu0 0.0
    %768 = vmatpush2.msra.mxu0 0.0
    %769 = vmatprep.subr.mxu0 0.0
    %770 = vmatpush2.msra.mxu0 0.0
    %771 = vmatprep.subr.mxu0 0.0
    %772 = vmatpush2.msra.mxu0 0.0
    %773 = vmatprep.subr.mxu0 0.0
    %774 = vmatpush2.msra.mxu0 0.0
    %775 = vmatprep.subr.mxu0 0.0
    %776 = vmatpush2.msra.mxu0 0.0
    %777 = vmatprep.subr.mxu0 0.0
    %778 = vmatpush2.msra.mxu0 0.0
    %779 = vmatprep.subr.mxu0 0.0
    %780 = vmatpush2.msra.mxu0 0.0
    %781 = vmatprep.mubr.f32.mxu0 0.0
    %782 = vmatmul.mubr.f32.gmra.mxu0 %v715
    %v783 = vpop.f32.mrf.mxu0
    %v784 = vadd.f32 0.0, %v783
    %v785 = vpop.f32.mrf.mxu0
    %786 = vdwg.mxu0
    %787 = vrot.lane.b32.xlu0 %v120, 112
    %v788 = vpop.permute.xlu0 %787
    %789 = vrot.lane.b32.xlu0 %v120, 80
    %v790 = vpop.permute.xlu0 %789
    %v791 = vsel %vm131, %v788, 0
    %v793 = vsel %vm131, %v790, 0
    %795 = vmatprep.subr.mxu0 0.0
    %796 = vmatpush1.xpose.msra.mxu0 0.0
    %797 = vmatprep.subr.mxu0 0.0
    %798 = vmatpush1.xpose.msra.mxu0 0.0
    %799 = vmatprep.subr.mxu0 0.0
    %800 = vmatpush1.xpose.msra.mxu0 0.0
    %801 = vmatprep.subr.mxu0 0.0
    %802 = vmatpush1.xpose.msra.mxu0 0.0
    %803 = vmatprep.subr.mxu0 0.0
    %804 = vmatpush1.xpose.msra.mxu0 0.0
    %805 = vmatprep.subr.mxu0 0.0
    %806 = vmatpush1.xpose.msra.mxu0 0.0
    %807 = vmatprep.subr.mxu0 0.0
    %808 = vmatpush1.xpose.msra.mxu0 0.0
    %809 = vmatprep.subr.mxu0 0.0
    %810 = vmatpush1.xpose.msra.mxu0 0.0
    %811 = vmatprep.subr.mxu0 0.0
    %812 = vmatpush1.xpose.msra.mxu0 0.0
    %813 = vmatprep.subr.mxu0 0.0
    %814 = vmatpush1.xpose.msra.mxu0 0.0
    %815 = vmatprep.subr.mxu0 0.0
    %816 = vmatpush1.xpose.msra.mxu0 0.0
    %817 = vmatprep.subr.mxu0 0.0
    %818 = vmatpush1.xpose.msra.mxu0 0.0
    %819 = vmatprep.subr.mxu0 0.0
    %820 = vmatpush1.xpose.msra.mxu0 0.0
    %821 = vmatprep.subr.mxu0 0.0
    %822 = vmatpush1.xpose.msra.mxu0 0.0
    %823 = vmatprep.subr.mxu0 0.0
    %824 = vmatpush1.xpose.msra.mxu0 0.0
    %825 = vmatprep.subr.mxu0 0.0
    %826 = vmatpush1.xpose.msra.mxu0 %v793
    %827 = vmatprep.subr.mxu0 0.0
    %828 = vmatpush2.xpose.msra.mxu0 0.0
    %829 = vmatprep.subr.mxu0 0.0
    %830 = vmatpush2.xpose.msra.mxu0 0.0
    %831 = vmatprep.subr.mxu0 0.0
    %832 = vmatpush2.xpose.msra.mxu0 0.0
    %833 = vmatprep.subr.mxu0 0.0
    %834 = vmatpush2.xpose.msra.mxu0 0.0
    %835 = vmatprep.subr.mxu0 0.0
    %836 = vmatpush2.xpose.msra.mxu0 0.0
    %837 = vmatprep.subr.mxu0 0.0
    %838 = vmatpush2.xpose.msra.mxu0 0.0
    %839 = vmatprep.subr.mxu0 0.0
    %840 = vmatpush2.xpose.msra.mxu0 0.0
    %841 = vmatprep.subr.mxu0 0.0
    %842 = vmatpush2.xpose.msra.mxu0 0.0
    %843 = vmatprep.subr.mxu0 0.0
    %844 = vmatpush2.xpose.msra.mxu0 0.0
    %845 = vmatprep.subr.mxu0 0.0
    %846 = vmatpush2.xpose.msra.mxu0 0.0
    %847 = vmatprep.subr.mxu0 0.0
    %848 = vmatpush2.xpose.msra.mxu0 0.0
    %849 = vmatprep.subr.mxu0 0.0
    %850 = vmatpush2.xpose.msra.mxu0 0.0
    %851 = vmatprep.subr.mxu0 0.0
    %852 = vmatpush2.xpose.msra.mxu0 0.0
    %853 = vmatprep.subr.mxu0 0.0
    %854 = vmatpush2.xpose.msra.mxu0 0.0
    %855 = vmatprep.subr.mxu0 0.0
    %856 = vmatpush2.xpose.msra.mxu0 0.0
    %857 = vmatprep.subr.mxu0 0.0
    %858 = vmatpush2.xpose.msra.mxu0 0.0
    %859 = vmatprep.mubr.f32.mxu0 0.0
    %860 = vmatmul.mubr.f32.gmra.mxu0 %v791
    %v861 = vpop.f32.mrf.mxu0
    %v862 = vadd.f32 0.0, %v861
    %v863 = vpop.f32.mrf.mxu0
    %864 = vdwg.mxu0
    %865 = vrot.lane.b32.xlu0 %v125, 112
    %v866 = vpop.permute.xlu0 %865
    %867 = vrot.lane.b32.xlu0 %v125, 80
    %v868 = vpop.permute.xlu0 %867
    %v869 = vsel %vm131, %v866, 0
    %v871 = vsel %vm131, %v868, 0
    %873 = vmatprep.subr.mxu0 0.0
    %874 = vmatpush1.xpose.msra.mxu0 0.0
    %875 = vmatprep.subr.mxu0 0.0
    %876 = vmatpush1.xpose.msra.mxu0 0.0
    %877 = vmatprep.subr.mxu0 0.0
    %878 = vmatpush1.xpose.msra.mxu0 0.0
    %879 = vmatprep.subr.mxu0 0.0
    %880 = vmatpush1.xpose.msra.mxu0 0.0
    %881 = vmatprep.subr.mxu0 0.0
    %882 = vmatpush1.xpose.msra.mxu0 0.0
    %883 = vmatprep.subr.mxu0 0.0
    %884 = vmatpush1.xpose.msra.mxu0 0.0
    %885 = vmatprep.subr.mxu0 0.0
    %886 = vmatpush1.xpose.msra.mxu0 0.0
    %887 = vmatprep.subr.mxu0 0.0
    %888 = vmatpush1.xpose.msra.mxu0 0.0
    %889 = vmatprep.subr.mxu0 0.0
    %890 = vmatpush1.xpose.msra.mxu0 0.0
    %891 = vmatprep.subr.mxu0 0.0
    %892 = vmatpush1.xpose.msra.mxu0 0.0
    %893 = vmatprep.subr.mxu0 0.0
    %894 = vmatpush1.xpose.msra.mxu0 0.0
    %895 = vmatprep.subr.mxu0 0.0
    %896 = vmatpush1.xpose.msra.mxu0 0.0
    %897 = vmatprep.subr.mxu0 0.0
    %898 = vmatpush1.xpose.msra.mxu0 0.0
    %899 = vmatprep.subr.mxu0 0.0
    %900 = vmatpush1.xpose.msra.mxu0 0.0
    %901 = vmatprep.subr.mxu0 0.0
    %902 = vmatpush1.xpose.msra.mxu0 0.0
    %903 = vmatprep.subr.mxu0 0.0
    %904 = vmatpush1.xpose.msra.mxu0 %v871
    %905 = vmatprep.subr.mxu0 0.0
    %906 = vmatpush2.xpose.msra.mxu0 0.0
    %907 = vmatprep.subr.mxu0 0.0
    %908 = vmatpush2.xpose.msra.mxu0 0.0
    %909 = vmatprep.subr.mxu0 0.0
    %910 = vmatpush2.xpose.msra.mxu0 0.0
    %911 = vmatprep.subr.mxu0 0.0
    %912 = vmatpush2.xpose.msra.mxu0 0.0
    %913 = vmatprep.subr.mxu0 0.0
    %914 = vmatpush2.xpose.msra.mxu0 0.0
    %915 = vmatprep.subr.mxu0 0.0
    %916 = vmatpush2.xpose.msra.mxu0 0.0
    %917 = vmatprep.subr.mxu0 0.0
    %918 = vmatpush2.xpose.msra.mxu0 0.0
    %919 = vmatprep.subr.mxu0 0.0
    %920 = vmatpush2.xpose.msra.mxu0 0.0
    %921 = vmatprep.subr.mxu0 0.0
    %922 = vmatpush2.xpose.msra.mxu0 0.0
    %923 = vmatprep.subr.mxu0 0.0
    %924 = vmatpush2.xpose.msra.mxu0 0.0
    %925 = vmatprep.subr.mxu0 0.0
    %926 = vmatpush2.xpose.msra.mxu0 0.0
    %927 = vmatprep.subr.mxu0 0.0
    %928 = vmatpush2.xpose.msra.mxu0 0.0
    %929 = vmatprep.subr.mxu0 0.0
    %930 = vmatpush2.xpose.msra.mxu0 0.0
    %931 = vmatprep.subr.mxu0 0.0
    %932 = vmatpush2.xpose.msra.mxu0 0.0
    %933 = vmatprep.subr.mxu0 0.0
    %934 = vmatpush2.xpose.msra.mxu0 0.0
    %935 = vmatprep.subr.mxu0 0.0
    %936 = vmatpush2.xpose.msra.mxu0 0.0
    %937 = vmatprep.mubr.f32.mxu0 0.0
    %938 = vmatmul.mubr.f32.gmra.mxu0 %v869
    %v939 = vpop.f32.mrf.mxu0
    %v940 = vadd.f32 0.0, %v939
    %v941 = vpop.f32.mrf.mxu0
    %942 = vdwg.mxu0
    %v943 = vsel %vm131, %v862, -inf
    %944 = vmax.xlane.f32.xlu0 %v943
    %v945 = vpop.xlane.xlu0 %944
    %v946 = vsel %vm131, %v940, -inf
    %947 = vmax.xlane.f32.xlu0 %v946
    %v948 = vpop.xlane.xlu0 %947
    %v949 = vsub.f32 %v862, %v945
    %v950 = vsub.f32 %v940, %v948
    %v951 = vmul.f32 %v949, 1.442695
    %v952 = vpow.pop %v951
    %v953 = vmul.f32 %v950, 1.442695
    %v954 = vpow.pop %v953
    %v955 = vsel %vm131, %v952, 0.0
    %956 = vadd.xlane.f32.xlu0 %v955
    %v957 = vpop.xlane.xlu0 %956
    %v958 = vsel %vm131, %v954, 0.0
    %959 = vadd.xlane.f32.xlu0 %v958
    %v960 = vpop.xlane.xlu0 %959
    %v961 = vrcp.pop %v957
    %v962 = vrcp.pop %v960
    %v963 = vmul.f32 %v952, %v961
    %v964 = vmul.f32 %v954, %v962
    %965 = vrot.lane.b32.xlu0 %v120, 48
    %v966 = vpop.permute.xlu0 %965
    %v969 = vsel %vm131, %v963, 0
    %971 = vmatprep.subr.mxu0 0.0
    %972 = vmatpush1.msra.mxu0 0.0
    %973 = vmatprep.subr.mxu0 0.0
    %974 = vmatpush1.msra.mxu0 0.0
    %975 = vmatprep.subr.mxu0 0.0
    %976 = vmatpush1.msra.mxu0 0.0
    %977 = vmatprep.subr.mxu0 0.0
    %978 = vmatpush1.msra.mxu0 0.0
    %979 = vmatprep.subr.mxu0 0.0
    %980 = vmatpush1.msra.mxu0 0.0
    %981 = vmatprep.subr.mxu0 0.0
    %982 = vmatpush1.msra.mxu0 0.0
    %983 = vmatprep.subr.mxu0 0.0
    %984 = vmatpush1.msra.mxu0 0.0
    %985 = vmatprep.subr.mxu0 0.0
    %986 = vmatpush1.msra.mxu0 0.0
    %987 = vmatprep.subr.mxu0 0.0
    %988 = vmatpush1.msra.mxu0 0.0
    %989 = vmatprep.subr.mxu0 0.0
    %990 = vmatpush1.msra.mxu0 0.0
    %991 = vmatprep.subr.mxu0 0.0
    %992 = vmatpush1.msra.mxu0 0.0
    %993 = vmatprep.subr.mxu0 0.0
    %994 = vmatpush1.msra.mxu0 0.0
    %995 = vmatprep.subr.mxu0 0.0
    %996 = vmatpush1.msra.mxu0 0.0
    %997 = vmatprep.subr.mxu0 0.0
    %998 = vmatpush1.msra.mxu0 0.0
    %999 = vmatprep.subr.mxu0 0.0
    %1000 = vmatpush1.msra.mxu0 0.0
    %1001 = vmatprep.subr.mxu0 0.0
    %1002 = vmatpush1.msra.mxu0 %v966
    %1003 = vmatprep.subr.mxu0 0.0
    %1004 = vmatpush2.msra.mxu0 0.0
    %1005 = vmatprep.subr.mxu0 0.0
    %1006 = vmatpush2.msra.mxu0 0.0
    %1007 = vmatprep.subr.mxu0 0.0
    %1008 = vmatpush2.msra.mxu0 0.0
    %1009 = vmatprep.subr.mxu0 0.0
    %1010 = vmatpush2.msra.mxu0 0.0
    %1011 = vmatprep.subr.mxu0 0.0
    %1012 = vmatpush2.msra.mxu0 0.0
    %1013 = vmatprep.subr.mxu0 0.0
    %1014 = vmatpush2.msra.mxu0 0.0
    %1015 = vmatprep.subr.mxu0 0.0
    %1016 = vmatpush2.msra.mxu0 0.0
    %1017 = vmatprep.subr.mxu0 0.0
    %1018 = vmatpush2.msra.mxu0 0.0
    %1019 = vmatprep.subr.mxu0 0.0
    %1020 = vmatpush2.msra.mxu0 0.0
    %1021 = vmatprep.subr.mxu0 0.0
    %1022 = vmatpush2.msra.mxu0 0.0
    %1023 = vmatprep.subr.mxu0 0.0
    %1024 = vmatpush2.msra.mxu0 0.0
    %1025 = vmatprep.subr.mxu0 0.0
    %1026 = vmatpush2.msra.mxu0 0.0
    %1027 = vmatprep.subr.mxu0 0.0
    %1028 = vmatpush2.msra.mxu0 0.0
    %1029 = vmatprep.subr.mxu0 0.0
    %1030 = vmatpush2.msra.mxu0 0.0
    %1031 = vmatprep.subr.mxu0 0.0
    %1032 = vmatpush2.msra.mxu0 0.0
    %1033 = vmatprep.subr.mxu0 0.0
    %1034 = vmatpush2.msra.mxu0 0.0
    %1035 = vmatprep.mubr.f32.mxu0 0.0
    %1036 = vmatmul.mubr.f32.gmra.mxu0 %v969
    %v1037 = vpop.f32.mrf.mxu0
    %v1038 = vadd.f32 0.0, %v1037
    %v1039 = vpop.f32.mrf.mxu0
    %1040 = vdwg.mxu0
    %1041 = vrot.lane.b32.xlu0 %v125, 48
    %v1042 = vpop.permute.xlu0 %1041
    %v1045 = vsel %vm131, %v964, 0
    %1047 = vmatprep.subr.mxu0 0.0
    %1048 = vmatpush1.msra.mxu0 0.0
    %1049 = vmatprep.subr.mxu0 0.0
    %1050 = vmatpush1.msra.mxu0 0.0
    %1051 = vmatprep.subr.mxu0 0.0
    %1052 = vmatpush1.msra.mxu0 0.0
    %1053 = vmatprep.subr.mxu0 0.0
    %1054 = vmatpush1.msra.mxu0 0.0
    %1055 = vmatprep.subr.mxu0 0.0
    %1056 = vmatpush1.msra.mxu0 0.0
    %1057 = vmatprep.subr.mxu0 0.0
    %1058 = vmatpush1.msra.mxu0 0.0
    %1059 = vmatprep.subr.mxu0 0.0
    %1060 = vmatpush1.msra.mxu0 0.0
    %1061 = vmatprep.subr.mxu0 0.0
    %1062 = vmatpush1.msra.mxu0 0.0
    %1063 = vmatprep.subr.mxu0 0.0
    %1064 = vmatpush1.msra.mxu0 0.0
    %1065 = vmatprep.subr.mxu0 0.0
    %1066 = vmatpush1.msra.mxu0 0.0
    %1067 = vmatprep.subr.mxu0 0.0
    %1068 = vmatpush1.msra.mxu0 0.0
    %1069 = vmatprep.subr.mxu0 0.0
    %1070 = vmatpush1.msra.mxu0 0.0
    %1071 = vmatprep.subr.mxu0 0.0
    %1072 = vmatpush1.msra.mxu0 0.0
    %1073 = vmatprep.subr.mxu0 0.0
    %1074 = vmatpush1.msra.mxu0 0.0
    %1075 = vmatprep.subr.mxu0 0.0
    %1076 = vmatpush1.msra.mxu0 0.0
    %1077 = vmatprep.subr.mxu0 0.0
    %1078 = vmatpush1.msra.mxu0 %v1042
    %1079 = vmatprep.subr.mxu0 0.0
    %1080 = vmatpush2.msra.mxu0 0.0
    %1081 = vmatprep.subr.mxu0 0.0
    %1082 = vmatpush2.msra.mxu0 0.0
    %1083 = vmatprep.subr.mxu0 0.0
    %1084 = vmatpush2.msra.mxu0 0.0
    %1085 = vmatprep.subr.mxu0 0.0
    %1086 = vmatpush2.msra.mxu0 0.0
    %1087 = vmatprep.subr.mxu0 0.0
    %1088 = vmatpush2.msra.mxu0 0.0
    %1089 = vmatprep.subr.mxu0 0.0
    %1090 = vmatpush2.msra.mxu0 0.0
    %1091 = vmatprep.subr.mxu0 0.0
    %1092 = vmatpush2.msra.mxu0 0.0
    %1093 = vmatprep.subr.mxu0 0.0
    %1094 = vmatpush2.msra.mxu0 0.0
    %1095 = vmatprep.subr.mxu0 0.0
    %1096 = vmatpush2.msra.mxu0 0.0
    %1097 = vmatprep.subr.mxu0 0.0
    %1098 = vmatpush2.msra.mxu0 0.0
    %1099 = vmatprep.subr.mxu0 0.0
    %1100 = vmatpush2.msra.mxu0 0.0
    %1101 = vmatprep.subr.mxu0 0.0
    %1102 = vmatpush2.msra.mxu0 0.0
    %1103 = vmatprep.subr.mxu0 0.0
    %1104 = vmatpush2.msra.mxu0 0.0
    %1105 = vmatprep.subr.mxu0 0.0
    %1106 = vmatpush2.msra.mxu0 0.0
    %1107 = vmatprep.subr.mxu0 0.0
    %1108 = vmatpush2.msra.mxu0 0.0
    %1109 = vmatprep.subr.mxu0 0.0
    %1110 = vmatpush2.msra.mxu0 0.0
    %1111 = vmatprep.mubr.f32.mxu0 0.0
    %1112 = vmatmul.mubr.f32.gmra.mxu0 %v1045
    %v1113 = vpop.f32.mrf.mxu0
    %v1114 = vadd.f32 0.0, %v1113
    %v1115 = vpop.f32.mrf.mxu0
    %1116 = vdwg.mxu0
    %1117 = vrot.lane.b32.xlu0 %v120, 104
    %v1118 = vpop.permute.xlu0 %1117
    %1119 = vrot.lane.b32.xlu0 %v120, 72
    %v1120 = vpop.permute.xlu0 %1119
    %v1121 = vsel %vm131, %v1118, 0
    %v1123 = vsel %vm131, %v1120, 0
    %1125 = vmatprep.subr.mxu0 0.0
    %1126 = vmatpush1.xpose.msra.mxu0 0.0
    %1127 = vmatprep.subr.mxu0 0.0
    %1128 = vmatpush1.xpose.msra.mxu0 0.0
    %1129 = vmatprep.subr.mxu0 0.0
    %1130 = vmatpush1.xpose.msra.mxu0 0.0
    %1131 = vmatprep.subr.mxu0 0.0
    %1132 = vmatpush1.xpose.msra.mxu0 0.0
    %1133 = vmatprep.subr.mxu0 0.0
    %1134 = vmatpush1.xpose.msra.mxu0 0.0
    %1135 = vmatprep.subr.mxu0 0.0
    %1136 = vmatpush1.xpose.msra.mxu0 0.0
    %1137 = vmatprep.subr.mxu0 0.0
    %1138 = vmatpush1.xpose.msra.mxu0 0.0
    %1139 = vmatprep.subr.mxu0 0.0
    %1140 = vmatpush1.xpose.msra.mxu0 0.0
    %1141 = vmatprep.subr.mxu0 0.0
    %1142 = vmatpush1.xpose.msra.mxu0 0.0
    %1143 = vmatprep.subr.mxu0 0.0
    %1144 = vmatpush1.xpose.msra.mxu0 0.0
    %1145 = vmatprep.subr.mxu0 0.0
    %1146 = vmatpush1.xpose.msra.mxu0 0.0
    %1147 = vmatprep.subr.mxu0 0.0
    %1148 = vmatpush1.xpose.msra.mxu0 0.0
    %1149 = vmatprep.subr.mxu0 0.0
    %1150 = vmatpush1.xpose.msra.mxu0 0.0
    %1151 = vmatprep.subr.mxu0 0.0
    %1152 = vmatpush1.xpose.msra.mxu0 0.0
    %1153 = vmatprep.subr.mxu0 0.0
    %1154 = vmatpush1.xpose.msra.mxu0 0.0
    %1155 = vmatprep.subr.mxu0 0.0
    %1156 = vmatpush1.xpose.msra.mxu0 %v1123
    %1157 = vmatprep.subr.mxu0 0.0
    %1158 = vmatpush2.xpose.msra.mxu0 0.0
    %1159 = vmatprep.subr.mxu0 0.0
    %1160 = vmatpush2.xpose.msra.mxu0 0.0
    %1161 = vmatprep.subr.mxu0 0.0
    %1162 = vmatpush2.xpose.msra.mxu0 0.0
    %1163 = vmatprep.subr.mxu0 0.0
    %1164 = vmatpush2.xpose.msra.mxu0 0.0
    %1165 = vmatprep.subr.mxu0 0.0
    %1166 = vmatpush2.xpose.msra.mxu0 0.0
    %1167 = vmatprep.subr.mxu0 0.0
    %1168 = vmatpush2.xpose.msra.mxu0 0.0
    %1169 = vmatprep.subr.mxu0 0.0
    %1170 = vmatpush2.xpose.msra.mxu0 0.0
    %1171 = vmatprep.subr.mxu0 0.0
    %1172 = vmatpush2.xpose.msra.mxu0 0.0
    %1173 = vmatprep.subr.mxu0 0.0
    %1174 = vmatpush2.xpose.msra.mxu0 0.0
    %1175 = vmatprep.subr.mxu0 0.0
    %1176 = vmatpush2.xpose.msra.mxu0 0.0
    %1177 = vmatprep.subr.mxu0 0.0
    %1178 = vmatpush2.xpose.msra.mxu0 0.0
    %1179 = vmatprep.subr.mxu0 0.0
    %1180 = vmatpush2.xpose.msra.mxu0 0.0
    %1181 = vmatprep.subr.mxu0 0.0
    %1182 = vmatpush2.xpose.msra.mxu0 0.0
    %1183 = vmatprep.subr.mxu0 0.0
    %1184 = vmatpush2.xpose.msra.mxu0 0.0
    %1185 = vmatprep.subr.mxu0 0.0
    %1186 = vmatpush2.xpose.msra.mxu0 0.0
    %1187 = vmatprep.subr.mxu0 0.0
    %1188 = vmatpush2.xpose.msra.mxu0 0.0
    %1189 = vmatprep.mubr.f32.mxu0 0.0
    %1190 = vmatmul.mubr.f32.gmra.mxu0 %v1121
    %v1191 = vpop.f32.mrf.mxu0
    %v1192 = vadd.f32 0.0, %v1191
    %v1193 = vpop.f32.mrf.mxu0
    %1194 = vdwg.mxu0
    %1195 = vrot.lane.b32.xlu0 %v125, 104
    %v1196 = vpop.permute.xlu0 %1195
    %1197 = vrot.lane.b32.xlu0 %v125, 72
    %v1198 = vpop.permute.xlu0 %1197
    %v1199 = vsel %vm131, %v1196, 0
    %v1201 = vsel %vm131, %v1198, 0
    %1203 = vmatprep.subr.mxu0 0.0
    %1204 = vmatpush1.xpose.msra.mxu0 0.0
    %1205 = vmatprep.subr.mxu0 0.0
    %1206 = vmatpush1.xpose.msra.mxu0 0.0
    %1207 = vmatprep.subr.mxu0 0.0
    %1208 = vmatpush1.xpose.msra.mxu0 0.0
    %1209 = vmatprep.subr.mxu0 0.0
    %1210 = vmatpush1.xpose.msra.mxu0 0.0
    %1211 = vmatprep.subr.mxu0 0.0
    %1212 = vmatpush1.xpose.msra.mxu0 0.0
    %1213 = vmatprep.subr.mxu0 0.0
    %1214 = vmatpush1.xpose.msra.mxu0 0.0
    %1215 = vmatprep.subr.mxu0 0.0
    %1216 = vmatpush1.xpose.msra.mxu0 0.0
    %1217 = vmatprep.subr.mxu0 0.0
    %1218 = vmatpush1.xpose.msra.mxu0 0.0
    %1219 = vmatprep.subr.mxu0 0.0
    %1220 = vmatpush1.xpose.msra.mxu0 0.0
    %1221 = vmatprep.subr.mxu0 0.0
    %1222 = vmatpush1.xpose.msra.mxu0 0.0
    %1223 = vmatprep.subr.mxu0 0.0
    %1224 = vmatpush1.xpose.msra.mxu0 0.0
    %1225 = vmatprep.subr.mxu0 0.0
    %1226 = vmatpush1.xpose.msra.mxu0 0.0
    %1227 = vmatprep.subr.mxu0 0.0
    %1228 = vmatpush1.xpose.msra.mxu0 0.0
    %1229 = vmatprep.subr.mxu0 0.0
    %1230 = vmatpush1.xpose.msra.mxu0 0.0
    %1231 = vmatprep.subr.mxu0 0.0
    %1232 = vmatpush1.xpose.msra.mxu0 0.0
    %1233 = vmatprep.subr.mxu0 0.0
    %1234 = vmatpush1.xpose.msra.mxu0 %v1201
    %1235 = vmatprep.subr.mxu0 0.0
    %1236 = vmatpush2.xpose.msra.mxu0 0.0
    %1237 = vmatprep.subr.mxu0 0.0
    %1238 = vmatpush2.xpose.msra.mxu0 0.0
    %1239 = vmatprep.subr.mxu0 0.0
    %1240 = vmatpush2.xpose.msra.mxu0 0.0
    %1241 = vmatprep.subr.mxu0 0.0
    %1242 = vmatpush2.xpose.msra.mxu0 0.0
    %1243 = vmatprep.subr.mxu0 0.0
    %1244 = vmatpush2.xpose.msra.mxu0 0.0
    %1245 = vmatprep.subr.mxu0 0.0
    %1246 = vmatpush2.xpose.msra.mxu0 0.0
    %1247 = vmatprep.subr.mxu0 0.0
    %1248 = vmatpush2.xpose.msra.mxu0 0.0
    %1249 = vmatprep.subr.mxu0 0.0
    %1250 = vmatpush2.xpose.msra.mxu0 0.0
    %1251 = vmatprep.subr.mxu0 0.0
    %1252 = vmatpush2.xpose.msra.mxu0 0.0
    %1253 = vmatprep.subr.mxu0 0.0
    %1254 = vmatpush2.xpose.msra.mxu0 0.0
    %1255 = vmatprep.subr.mxu0 0.0
    %1256 = vmatpush2.xpose.msra.mxu0 0.0
    %1257 = vmatprep.subr.mxu0 0.0
    %1258 = vmatpush2.xpose.msra.mxu0 0.0
    %1259 = vmatprep.subr.mxu0 0.0
    %1260 = vmatpush2.xpose.msra.mxu0 0.0
    %1261 = vmatprep.subr.mxu0 0.0
    %1262 = vmatpush2.xpose.msra.mxu0 0.0
    %1263 = vmatprep.subr.mxu0 0.0
    %1264 = vmatpush2.xpose.msra.mxu0 0.0
    %1265 = vmatprep.subr.mxu0 0.0
    %1266 = vmatpush2.xpose.msra.mxu0 0.0
    %1267 = vmatprep.mubr.f32.mxu0 0.0
    %1268 = vmatmul.mubr.f32.gmra.mxu0 %v1199
    %v1269 = vpop.f32.mrf.mxu0
    %v1270 = vadd.f32 0.0, %v1269
    %v1271 = vpop.f32.mrf.mxu0
    %1272 = vdwg.mxu0
    %v1273 = vsel %vm131, %v1192, -inf
    %1274 = vmax.xlane.f32.xlu0 %v1273
    %v1275 = vpop.xlane.xlu0 %1274
    %v1276 = vsel %vm131, %v1270, -inf
    %1277 = vmax.xlane.f32.xlu0 %v1276
    %v1278 = vpop.xlane.xlu0 %1277
    %v1279 = vsub.f32 %v1192, %v1275
    %v1280 = vsub.f32 %v1270, %v1278
    %v1281 = vmul.f32 %v1279, 1.442695
    %v1282 = vpow.pop %v1281
    %v1283 = vmul.f32 %v1280, 1.442695
    %v1284 = vpow.pop %v1283
    %v1285 = vsel %vm131, %v1282, 0.0
    %1286 = vadd.xlane.f32.xlu0 %v1285
    %v1287 = vpop.xlane.xlu0 %1286
    %v1288 = vsel %vm131, %v1284, 0.0
    %1289 = vadd.xlane.f32.xlu0 %v1288
    %v1290 = vpop.xlane.xlu0 %1289
    %v1291 = vrcp.pop %v1287
    %v1292 = vrcp.pop %v1290
    %v1293 = vmul.f32 %v1282, %v1291
    %v1294 = vmul.f32 %v1284, %v1292
    %1295 = vrot.lane.b32.xlu0 %v120, 40
    %v1296 = vpop.permute.xlu0 %1295
    %v1299 = vsel %vm131, %v1293, 0
    %1301 = vmatprep.subr.mxu0 0.0
    %1302 = vmatpush1.msra.mxu0 0.0
    %1303 = vmatprep.subr.mxu0 0.0
    %1304 = vmatpush1.msra.mxu0 0.0
    %1305 = vmatprep.subr.mxu0 0.0
    %1306 = vmatpush1.msra.mxu0 0.0
    %1307 = vmatprep.subr.mxu0 0.0
    %1308 = vmatpush1.msra.mxu0 0.0
    %1309 = vmatprep.subr.mxu0 0.0
    %1310 = vmatpush1.msra.mxu0 0.0
    %1311 = vmatprep.subr.mxu0 0.0
    %1312 = vmatpush1.msra.mxu0 0.0
    %1313 = vmatprep.subr.mxu0 0.0
    %1314 = vmatpush1.msra.mxu0 0.0
    %1315 = vmatprep.subr.mxu0 0.0
    %1316 = vmatpush1.msra.mxu0 0.0
    %1317 = vmatprep.subr.mxu0 0.0
    %1318 = vmatpush1.msra.mxu0 0.0
    %1319 = vmatprep.subr.mxu0 0.0
    %1320 = vmatpush1.msra.mxu0 0.0
    %1321 = vmatprep.subr.mxu0 0.0
    %1322 = vmatpush1.msra.mxu0 0.0
    %1323 = vmatprep.subr.mxu0 0.0
    %1324 = vmatpush1.msra.mxu0 0.0
    %1325 = vmatprep.subr.mxu0 0.0
    %1326 = vmatpush1.msra.mxu0 0.0
    %1327 = vmatprep.subr.mxu0 0.0
    %1328 = vmatpush1.msra.mxu0 0.0
    %1329 = vmatprep.subr.mxu0 0.0
    %1330 = vmatpush1.msra.mxu0 0.0
    %1331 = vmatprep.subr.mxu0 0.0
    %1332 = vmatpush1.msra.mxu0 %v1296
    %1333 = vmatprep.subr.mxu0 0.0
    %1334 = vmatpush2.msra.mxu0 0.0
    %1335 = vmatprep.subr.mxu0 0.0
    %1336 = vmatpush2.msra.mxu0 0.0
    %1337 = vmatprep.subr.mxu0 0.0
    %1338 = vmatpush2.msra.mxu0 0.0
    %1339 = vmatprep.subr.mxu0 0.0
    %1340 = vmatpush2.msra.mxu0 0.0
    %1341 = vmatprep.subr.mxu0 0.0
    %1342 = vmatpush2.msra.mxu0 0.0
    %1343 = vmatprep.subr.mxu0 0.0
    %1344 = vmatpush2.msra.mxu0 0.0
    %1345 = vmatprep.subr.mxu0 0.0
    %1346 = vmatpush2.msra.mxu0 0.0
    %1347 = vmatprep.subr.mxu0 0.0
    %1348 = vmatpush2.msra.mxu0 0.0
    %1349 = vmatprep.subr.mxu0 0.0
    %1350 = vmatpush2.msra.mxu0 0.0
    %1351 = vmatprep.subr.mxu0 0.0
    %1352 = vmatpush2.msra.mxu0 0.0
    %1353 = vmatprep.subr.mxu0 0.0
    %1354 = vmatpush2.msra.mxu0 0.0
    %1355 = vmatprep.subr.mxu0 0.0
    %1356 = vmatpush2.msra.mxu0 0.0
    %1357 = vmatprep.subr.mxu0 0.0
    %1358 = vmatpush2.msra.mxu0 0.0
    %1359 = vmatprep.subr.mxu0 0.0
    %1360 = vmatpush2.msra.mxu0 0.0
    %1361 = vmatprep.subr.mxu0 0.0
    %1362 = vmatpush2.msra.mxu0 0.0
    %1363 = vmatprep.subr.mxu0 0.0
    %1364 = vmatpush2.msra.mxu0 0.0
    %1365 = vmatprep.mubr.f32.mxu0 0.0
    %1366 = vmatmul.mubr.f32.gmra.mxu0 %v1299
    %v1367 = vpop.f32.mrf.mxu0
    %v1368 = vadd.f32 0.0, %v1367
    %v1369 = vpop.f32.mrf.mxu0
    %1370 = vdwg.mxu0
    %1371 = vrot.lane.b32.xlu0 %v125, 40
    %v1372 = vpop.permute.xlu0 %1371
    %v1375 = vsel %vm131, %v1294, 0
    %1377 = vmatprep.subr.mxu0 0.0
    %1378 = vmatpush1.msra.mxu0 0.0
    %1379 = vmatprep.subr.mxu0 0.0
    %1380 = vmatpush1.msra.mxu0 0.0
    %1381 = vmatprep.subr.mxu0 0.0
    %1382 = vmatpush1.msra.mxu0 0.0
    %1383 = vmatprep.subr.mxu0 0.0
    %1384 = vmatpush1.msra.mxu0 0.0
    %1385 = vmatprep.subr.mxu0 0.0
    %1386 = vmatpush1.msra.mxu0 0.0
    %1387 = vmatprep.subr.mxu0 0.0
    %1388 = vmatpush1.msra.mxu0 0.0
    %1389 = vmatprep.subr.mxu0 0.0
    %1390 = vmatpush1.msra.mxu0 0.0
    %1391 = vmatprep.subr.mxu0 0.0
    %1392 = vmatpush1.msra.mxu0 0.0
    %1393 = vmatprep.subr.mxu0 0.0
    %1394 = vmatpush1.msra.mxu0 0.0
    %1395 = vmatprep.subr.mxu0 0.0
    %1396 = vmatpush1.msra.mxu0 0.0
    %1397 = vmatprep.subr.mxu0 0.0
    %1398 = vmatpush1.msra.mxu0 0.0
    %1399 = vmatprep.subr.mxu0 0.0
    %1400 = vmatpush1.msra.mxu0 0.0
    %1401 = vmatprep.subr.mxu0 0.0
    %1402 = vmatpush1.msra.mxu0 0.0
    %1403 = vmatprep.subr.mxu0 0.0
    %1404 = vmatpush1.msra.mxu0 0.0
    %1405 = vmatprep.subr.mxu0 0.0
    %1406 = vmatpush1.msra.mxu0 0.0
    %1407 = vmatprep.subr.mxu0 0.0
    %1408 = vmatpush1.msra.mxu0 %v1372
    %1409 = vmatprep.subr.mxu0 0.0
    %1410 = vmatpush2.msra.mxu0 0.0
    %1411 = vmatprep.subr.mxu0 0.0
    %1412 = vmatpush2.msra.mxu0 0.0
    %1413 = vmatprep.subr.mxu0 0.0
    %1414 = vmatpush2.msra.mxu0 0.0
    %1415 = vmatprep.subr.mxu0 0.0
    %1416 = vmatpush2.msra.mxu0 0.0
    %1417 = vmatprep.subr.mxu0 0.0
    %1418 = vmatpush2.msra.mxu0 0.0
    %1419 = vmatprep.subr.mxu0 0.0
    %1420 = vmatpush2.msra.mxu0 0.0
    %1421 = vmatprep.subr.mxu0 0.0
    %1422 = vmatpush2.msra.mxu0 0.0
    %1423 = vmatprep.subr.mxu0 0.0
    %1424 = vmatpush2.msra.mxu0 0.0
    %1425 = vmatprep.subr.mxu0 0.0
    %1426 = vmatpush2.msra.mxu0 0.0
    %1427 = vmatprep.subr.mxu0 0.0
    %1428 = vmatpush2.msra.mxu0 0.0
    %1429 = vmatprep.subr.mxu0 0.0
    %1430 = vmatpush2.msra.mxu0 0.0
    %1431 = vmatprep.subr.mxu0 0.0
    %1432 = vmatpush2.msra.mxu0 0.0
    %1433 = vmatprep.subr.mxu0 0.0
    %1434 = vmatpush2.msra.mxu0 0.0
    %1435 = vmatprep.subr.mxu0 0.0
    %1436 = vmatpush2.msra.mxu0 0.0
    %1437 = vmatprep.subr.mxu0 0.0
    %1438 = vmatpush2.msra.mxu0 0.0
    %1439 = vmatprep.subr.mxu0 0.0
    %1440 = vmatpush2.msra.mxu0 0.0
    %1441 = vmatprep.mubr.f32.mxu0 0.0
    %1442 = vmatmul.mubr.f32.gmra.mxu0 %v1375
    %v1443 = vpop.f32.mrf.mxu0
    %v1444 = vadd.f32 0.0, %v1443
    %v1445 = vpop.f32.mrf.mxu0
    %1446 = vdwg.mxu0
    %1447 = vst.msk [vmem:[#allocation6] sm:$0xff] %vm131, %v303
    %1448 = vst.msk [vmem:[#allocation6 + $0x8] sm:$0xff] %vm131, %v304
    %1449 = vst.msk [vmem:[#allocation6 + $0x10] sm:$0xff] %vm131, %v633
    %1450 = vst.msk [vmem:[#allocation6 + $0x18] sm:$0xff] %vm131, %v634
    %1451 = vst.msk [vmem:[#allocation6 + $0x20] sm:$0xff] %vm131, %v963
    %1452 = vst.msk [vmem:[#allocation6 + $0x28] sm:$0xff] %vm131, %v964
    %1453 = vst.msk [vmem:[#allocation6 + $0x30] sm:$0xff] %vm131, %v1293
    %1454 = vst.msk [vmem:[#allocation6 + $0x38] sm:$0xff] %vm131, %v1294
    %1457 = vrot.lane.b32.xlu0 %v708, 8
    %v1458 = vpop.permute.xlu0 %1457
    %1459 = vrot.lane.b32.xlu0 %v784, 8
    %v1460 = vpop.permute.xlu0 %1459
    %1465 = vrot.lane.b32.xlu0 %v1038, 16
    %v1466 = vpop.permute.xlu0 %1465
    %1467 = vrot.lane.b32.xlu0 %v1114, 16
    %v1468 = vpop.permute.xlu0 %1467
    %1473 = vrot.lane.b32.xlu0 %v1368, 24
    %v1474 = vpop.permute.xlu0 %1473
    %1475 = vrot.lane.b32.xlu0 %v1444, 24
    %v1476 = vpop.permute.xlu0 %1475
    %v1479 = vsel %vm131, %v378, %v1458
    %v1480 = vsel %vm131, %v454, %v1460
    %vm1481 = vcmask 130048
    %v1482 = vsel %vm1481, %v1479, %v1466
    %v1483 = vsel %vm1481, %v1480, %v1468
    %vm1484 = vcmask 195584
    %v1485 = vsel %vm1484, %v1482, %v1474
    %v1486 = vsel %vm1484, %v1483, %v1476
    %v1487 = vadd.f32 %v1485, %v32
    %v1488 = vadd.f32 %v1486, %v33
    %vm1489 = vcmask 261120
    %v1490 = vsel %vm1489, %v1487, 0.0
    %1491 = vadd.xlane.f32.xlu0 %v1490
    %v1492 = vpop.xlane.xlu0 %1491
    %v1493 = vsel %vm1489, %v1488, 0.0
    %1494 = vadd.xlane.f32.xlu0 %v1493
    %v1495 = vpop.xlane.xlu0 %1494
    %v1496 = vrcp.pop 32.0
    %v1497 = vmul.f32 %v1492, %v1496
    %v1498 = vmul.f32 %v1495, %v1496
    %v1499 = vsub.f32 %v1487, %v1497
    %v1500 = vsub.f32 %v1488, %v1498
    %v1501 = vmul.f32 %v1499, %v1499
    %v1502 = vmul.f32 %v1500, %v1500
    %v1503 = vsel %vm1489, %v1501, 0.0
    %1504 = vadd.xlane.f32.xlu0 %v1503
    %v1505 = vpop.xlane.xlu0 %1504
    %v1506 = vsel %vm1489, %v1502, 0.0
    %1507 = vadd.xlane.f32.xlu0 %v1506
    %v1508 = vpop.xlane.xlu0 %1507
    %v1509 = vrcp.pop 31.0
    %v1510 = vmul.f32 %v1505, %v1509
    %v1511 = vmul.f32 %v1508, %v1509
    %v1512 = vrsqrt.pop %v1510
    %v1513 = vmul.f32 %v1510, %v1512
    %vm1514 = vcmp.eq.f32.partialorder %v1510, inf
    %v1515 = vsel %vm1514, %v1510, %v1513
    %vm1516 = vcmp.eq.f32.partialorder %v1510, 0.0
    %v1517 = vand.u32 %v1510, 2147483648
    %v1518 = vsel %vm1516, %v1517, %v1515
    %v1519 = vrsqrt.pop %v1511
    %v1520 = vmul.f32 %v1511, %v1519
    %vm1521 = vcmp.eq.f32.partialorder %v1511, inf
    %v1522 = vsel %vm1521, %v1511, %v1520
    %vm1523 = vcmp.eq.f32.partialorder %v1511, 0.0
    %v1524 = vand.u32 %v1511, 2147483648
    %v1525 = vsel %vm1523, %v1524, %v1522
    %v1526 = vld [vmem:[%s2] sm:$0x1]
    %v1527 = vld [vmem:[%s2 + $0x1] sm:$0x1]
    %v1528 = vadd.f32 %v1518, 0.001
    %v1529 = vadd.f32 %v1525, 0.001
    %v1530 = vrcp.pop %v1528
    %v1531 = vmul.f32 %v1499, %v1530
    %v1532 = vrcp.pop %v1529
    %v1533 = vmul.f32 %v1500, %v1532
    %v1534 = vlaneseq
    %v1535 = vshrl.u32 %v1534, 7
    %v1536 = vsub.s32 0, %v1535
    %v1537 = vrot.slane %v1526, %v1536
    %v1538 = vmul.f32 %v1531, %v1537
    %v1539 = vmul.f32 %v1533, %v1537
    %v1540 = vlaneseq
    %v1541 = vshrl.u32 %v1540, 7
    %v1542 = vsub.s32 0, %v1541
    %v1543 = vrot.slane %v1527, %v1542
    %v1544 = vadd.f32 %v1538, %v1543
    %v1545 = vadd.f32 %v1539, %v1543
    %1546 = vst.msk [vmem:[#allocation5] sm:$0xff] %vm1489, %v1544
    %1547 = vst.msk [vmem:[#allocation5 + $0x8] sm:$0xff] %vm1489, %v1545
    // Predicated region
    $region18: #{multi_head_attention.1} parent=1 // pred_check
      _
    $region19: #{multi_head_attention.1} parent=1 // pred_check_branch
      %1549 = sbr.rel (0) target = $region21
    $region20: #{multi_head_attention.1} parent=1 // pred_region
      %s1551 = ssub.s32 256, 256
      %1552 = vsyncadd [#allocation4], %s1551
      %s1553 = sshll.u32 [#allocation5], 4
      %s1554 = int_to_ptr.vmem [resolvable:$true] %s1553
      %1559 = dma.vmem_to_hbm [thread:$0]  %s1554, 256, %s3, [#allocation4], 128, 128, 8
    $region21: #{multi_head_attention.1} parent=1 // pred_fallthru
      _
    // Predicated region
    $region22: #{multi_head_attention.1} parent=1 // pred_check
      _
    $region23: #{multi_head_attention.1} parent=1 // pred_check_branch
      %1561 = sbr.rel (0) target = $region25
    $region24: #{multi_head_attention.1} parent=1 // pred_region
      %s1563 = ssub.s32 1024, 1024
      %1564 = vsyncadd [#allocation7], %s1563
      %s1565 = sshll.u32 [#allocation6], 4
      %s1566 = int_to_ptr.vmem [resolvable:$true] %s1565
      %1571 = dma.vmem_to_hbm [thread:$0]  %s1566, 1024, %s4, [#allocation7], 128, 128, 8
    $region25: #{multi_head_attention.1} parent=1 // pred_fallthru
      _
    // Predicated region
    $region26: #{multi_head_attention.1} parent=1 // pred_check
      _
    $region27: #{multi_head_attention.1} parent=1 // pred_check_branch
      %1573 = sbr.rel (0) target = $region29
    $region28: #{multi_head_attention.1} parent=1 // pred_region
      %1574 = dma.done [#allocation4], 256
    $region29: #{multi_head_attention.1} parent=1 // pred_fallthru
      _
    // Predicated region
    $region30: #{multi_head_attention.1} parent=1 // pred_check
      _
    $region31: #{multi_head_attention.1} parent=1 // pred_check_branch
      %1576 = sbr.rel (0) target = $region33
    $region32: #{multi_head_attention.1} parent=1 // pred_region
      %1577 = dma.done [#allocation7], 1024
    $region33: #{multi_head_attention.1} parent=1 // pred_fallthru
      _
    %1578 = vsyncpa [#allocation3], 1
    %1579 = vsyncpa [#allocation4], 1
    %1580 = vsyncpa [#allocation7], 1

</llo_original>
